<compile_context>
chip_gen: v6e
topology: v6e:2x2x1
jax: 0.10.0
libtpu: 0.0.40
codegen_flags: <defaults>
</compile_context>

<pallas_src>
import jax
import jax.numpy as jnp
import numpy as np
from jax.experimental import pallas as pl
from jax.experimental.pallas import tpu as pltpu

EPS = 1e-5
N_BLOCKS = 5
N_CBN = 2 * N_BLOCKS + 1  # bn0/bn1 per block + final bn


# -----------------------------------------------------------------------------
# Kernel bodies (one T tile per grid step)
# -----------------------------------------------------------------------------
def _cbn_relu_matmul(x_ref, scale_ref, shift_ref, w_ref, b_ref):
    """Folded CBN (x*scale+shift) -> ReLU -> MXU matmul (+bias), f32 accum."""
    B, Tt, H = x_ref.shape
    x = x_ref[...].astype(jnp.float32)
    y = jnp.maximum(x * scale_ref[...][:, None, :] + shift_ref[...][:, None, :], 0.0)
    acc = jnp.dot(y.reshape(B * Tt, H).astype(w_ref.dtype), w_ref[...],
                  preferred_element_type=jnp.float32)
    return acc + b_ref[...]


def _emit_act_and_stats(acc, y_ref, stats_ref):
    B, Tt, H = y_ref.shape
    # One traversal for sum and sum-of-squares, on the pre-cast f32 values.
    s = jnp.sum(acc, axis=0, keepdims=True)            # (1, H)
    ss = jnp.sum(acc * acc, axis=0, keepdims=True)     # (1, H)
    stats_ref[...] = jnp.concatenate([s, ss], axis=0)[None]   # (1, 2, H)
    y_ref[...] = acc.reshape(B, Tt, H).astype(y_ref.dtype)


def fc0_pass_kernel(x_ref, scale_ref, shift_ref, w_ref, b_ref, y_ref, stats_ref):
    acc = _cbn_relu_matmul(x_ref, scale_ref, shift_ref, w_ref, b_ref)
    _emit_act_and_stats(acc, y_ref, stats_ref)


def fc1_pass_kernel(x_ref, res_ref, scale_ref, shift_ref, w_ref, b_ref,
                    y_ref, stats_ref):
    B, Tt, H = x_ref.shape
    acc = _cbn_relu_matmul(x_ref, scale_ref, shift_ref, w_ref, b_ref)
    acc = acc + res_ref[...].astype(jnp.float32).reshape(B * Tt, H)   # skip conn
    _emit_act_and_stats(acc, y_ref, stats_ref)


def final_pass_kernel(x_ref, scale_ref, shift_ref, w_ref, b_ref, out_ref):
    x = x_ref[...].astype(jnp.float32)
    y = jnp.maximum(x * scale_ref[...][:, None, :] + shift_ref[...][:, None, :], 0.0)
    # fc_out has a single output channel -> cross-lane reduce.  The result is
    # (B, T_tile) with T on lanes, so the store stays lane-dense.
    out_ref[...] = jnp.sum(y * w_ref[...][None, :, :], axis=-1) + b_ref[...]


# -----------------------------------------------------------------------------
# VMEM budget + tile choice
# -----------------------------------------------------------------------------
def _vmem_limit_bytes():
    # 3/4 of physical VMEM: 96 MiB on v5e/v6e (128 MiB parts), 48 MiB on v7x.
    # Conservative fallback (do NOT assume 128 MiB physical) if the query fails.
    try:
        cap = pltpu.get_tpu_info().vmem_capacity_bytes
    except Exception:
        return 48 << 20
    return (cap * 3) // 4


def _choose_t_tile(B, T, H, act_bytes, vmem_budget):
    if T % 128 != 0:
        # TODO(synk): support ragged T via a masked tail tile (BN stats would
        # need the true element count); current users pad T to a lane multiple.
        raise ValueError("T must be a multiple of 128")
    resident = 2 * H * H * 2 + 8 * B * H * 4 + (1 << 20)   # weights + scale/shift + slack
    for cand in (4096, 2048, 1024, 512, 256, 128):
        if T % cand:
            continue
        per_step = 2 * 3 * B * cand * H * act_bytes        # x + res + y, double-buffered
        if per_step + resident <= int(0.7 * vmem_budget):
            return cand
    return 128


# -----------------------------------------------------------------------------
# pallas_call builders
# -----------------------------------------------------------------------------
def _layer_call(kernel, B, T, H, Tt, act_dtype, w_dtype, with_residual, vmem_limit):
    nt = T // Tt
    act_spec = pl.BlockSpec((B, Tt, H), lambda t: (0, t, 0))
    vec_spec = pl.BlockSpec((B, H), lambda t: (0, 0))
    in_specs = [act_spec]
    if with_residual:
        in_specs.append(act_spec)
    in_specs += [vec_spec, vec_spec,
                 pl.BlockSpec((H, H), lambda t: (0, 0)),     # resident weight
                 pl.BlockSpec((1, H), lambda t: (0, 0))]     # resident bias
    out_specs = [act_spec,
                 pl.BlockSpec((1, 2, H), lambda t: (t, 0, 0))]
    out_shape = [jax.ShapeDtypeStruct((B, T, H), act_dtype),
                 jax.ShapeDtypeStruct((nt, 2, H), jnp.float32)]
    n_act = 3 if with_residual else 2
    cost = pl.CostEstimate(
        flops=2 * B * T * H * H,
        transcendentals=0,
        bytes_accessed=n_act * B * T * H * int(jnp.dtype(act_dtype).itemsize)
        + H * H * int(jnp.dtype(w_dtype).itemsize))
    return pl.pallas_call(
        kernel,
        grid=(nt,),
        in_specs=in_specs,
        out_specs=out_specs,
        out_shape=out_shape,
        compiler_params=pltpu.CompilerParams(
            dimension_semantics=("parallel",),
            vmem_limit_bytes=vmem_limit),
        cost_estimate=cost)


def _final_call(B, T, H, Tt, act_dtype, vmem_limit):
    nt = T // Tt
    act_spec = pl.BlockSpec((B, Tt, H), lambda t: (0, t, 0))
    vec_spec = pl.BlockSpec((B, H), lambda t: (0, 0))
    cost = pl.CostEstimate(
        flops=2 * B * T * H,
        transcendentals=0,
        bytes_accessed=B * T * H * int(jnp.dtype(act_dtype).itemsize) + B * T * 4)
    return pl.pallas_call(
        final_pass_kernel,
        grid=(nt,),
        in_specs=[act_spec, vec_spec, vec_spec,
                  pl.BlockSpec((1, H), lambda t: (0, 0)),
                  pl.BlockSpec((1, 1), lambda t: (0, 0))],
        out_specs=pl.BlockSpec((B, Tt), lambda t: (0, t)),
        out_shape=jax.ShapeDtypeStruct((B, T), jnp.float32),
        compiler_params=pltpu.CompilerParams(
            dimension_semantics=("parallel",),
            vmem_limit_bytes=vmem_limit),
        cost_estimate=cost)


# -----------------------------------------------------------------------------
# One-time parameter packing (outside the per-call forward path)
# -----------------------------------------------------------------------------
def pack_params(params, weight_dtype=jnp.bfloat16):
    cbns = []
    for blk in params["blocks"]:
        cbns.append(blk["bn0"])
        cbns.append(blk["bn1"])
    cbns.append(params["bn"])

    # (c_dim, 2*N_CBN*h): [gamma_0..gamma_10 | beta_0..beta_10]  (kept in f32).
    gbw = jnp.concatenate([m["gw"].T for m in cbns]
                          + [m["bw"].T for m in cbns], axis=1)
    gbb = jnp.concatenate([m["gb"] for m in cbns]
                          + [m["bb"] for m in cbns])[None, :]

    fc0w = jnp.stack([blk["fc0_w"].T for blk in params["blocks"]]).astype(weight_dtype)
    fc0b = jnp.stack([blk["fc0_b"] for blk in params["blocks"]])
    fc1w = jnp.stack([blk["fc1_w"].T for blk in params["blocks"]]).astype(weight_dtype)
    fc1b = jnp.stack([blk["fc1_b"] for blk in params["blocks"]])

    return dict(
        fcp_w=params["fc_p_w"].T,            # (p_dim, h)
        fcp_b=params["fc_p_b"][None, :],     # (1, h)
        gbw=gbw, gbb=gbb,
        fc0w=fc0w, fc0b=fc0b, fc1w=fc1w, fc1b=fc1b,
        fow=params["fc_out_w"],              # (1, h)
        fob=params["fc_out_b"][None, :],     # (1, 1)
    )


# -----------------------------------------------------------------------------
# Forward pass: XLA glue (fc_p, conditioning, stats combine) + 11 Pallas passes
# -----------------------------------------------------------------------------
def decoder_cbn_pallas(p, c, packed):
    B, T, _ = p.shape
    H = packed["fcp_w"].shape[1]
    w_dtype = packed["fc0w"].dtype
    act_dtype = w_dtype                      # HBM staging dtype for activations
    vmem_limit = _vmem_limit_bytes()
    Tt = _choose_t_tile(B, T, H, int(jnp.dtype(act_dtype).itemsize), vmem_limit)
    n = B * T

    # ---- fc_p encode + its BN stats (plain XLA: K = p_dim = 3, keeps the
    # lane-padded (B,T,3) tensor out of VMEM entirely) -----------------------
    enc_f32 = jnp.einsum("btp,ph->bth", p, packed["fcp_w"]) + packed["fcp_b"][None]
    stats = (jnp.sum(enc_f32, axis=(0, 1)), jnp.sum(enc_f32 * enc_f32, axis=(0, 1)))
    enc = enc_f32.astype(act_dtype)

    # ---- all 22 gamma/beta conditioning Linears in ONE tiny matmul, once ----
    gb = jnp.dot(c, packed["gbw"], preferred_element_type=jnp.float32) + packed["gbb"]

    def scale_shift(idx, s, ss):
        # Fold BN(mean/var, biased, eps) and gamma/beta into per-(B,H)
        # scale/shift so each kernel pass is a single fused multiply-add.
        mean = s * (1.0 / n)
        var = jnp.maximum(ss * (1.0 / n) - mean * mean, 0.0)
        inv = jax.lax.rsqrt(var + EPS)
        gamma = gb[:, idx * H:(idx + 1) * H]
        beta = gb[:, (N_CBN + idx) * H:(N_CBN + idx + 1) * H]
        return gamma * inv[None, :], beta - gamma * (mean * inv)[None, :]

    fc0_call = _layer_call(fc0_pass_kernel, B, T, H, Tt, act_dtype, w_dtype,
                           with_residual=False, vmem_limit=vmem_limit)
    fc1_call = _layer_call(fc1_pass_kernel, B, T, H, Tt, act_dtype, w_dtype,
                           with_residual=True, vmem_limit=vmem_limit)
    fin_call = _final_call(B, T, H, Tt, act_dtype, vmem_limit)

    for i in range(N_BLOCKS):
        sc, sh = scale_shift(2 * i, *stats)
        h, ps = fc0_call(enc, sc, sh, packed["fc0w"][i], packed["fc0b"][i][None, :])
        ps = jnp.sum(ps, axis=0)                       # combine per-tile partials
        sc, sh = scale_shift(2 * i + 1, ps[0], ps[1])
        enc, ps = fc1_call(h, enc, sc, sh,
                           packed["fc1w"][i], packed["fc1b"][i][None, :])
        ps = jnp.sum(ps, axis=0)
        stats = (ps[0], ps[1])

    sc, sh = scale_shift(N_CBN - 1, *stats)
    return fin_call(enc, sc, sh, packed["fow"], packed["fob"])


# -----------------------------------------------------------------------------
# Pure-JAX reference (mirrors the PyTorch NCL code path) for correctness check
# -----------------------------------------------------------------------------
def decoder_cbn_ref(p, c, params):
    x = jnp.swapaxes(p, 1, 2)                        # (B, p_dim, T) == NCL

    def conv1(x, w, b):
        y = jnp.einsum("oi,bit->bot", w, x)
        return y + b[None, :, None]

    def bn(x):
        mean = jnp.mean(x, axis=(0, 2), keepdims=True)
        var = jnp.mean((x - mean) ** 2, axis=(0, 2), keepdims=True)
        return (x - mean) / jnp.sqrt(var + EPS)

    def cbn(x, m):
        gamma = c @ m["gw"].T + m["gb"]
        beta = c @ m["bw"].T + m["bb"]
        return gamma[:, :, None] * bn(x) + beta[:, :, None]

    enc = conv1(x, params["fc_p_w"], params["fc_p_b"])
    for blk in params["blocks"]:
        net = jax.nn.relu(cbn(enc, blk["bn0"]))
        net = conv1(net, blk["fc0_w"], blk["fc0_b"])
        net = jax.nn.relu(cbn(net, blk["bn1"]))
        net = conv1(net, blk["fc1_w"], blk["fc1_b"])
        enc = enc + net
    net = jax.nn.relu(cbn(enc, params["bn"]))
    out = conv1(net, params["fc_out_w"], params["fc_out_b"])   # (B, 1, T)
    return out[:, 0, :]


# -----------------------------------------------------------------------------
# Deterministic parameter construction (shapes follow the PyTorch __init__;
# values are random-but-deterministic so every code path is exercised).
# -----------------------------------------------------------------------------
def init_params(key, p_dim, c_dim, h_dim):
    keys = iter(jax.random.split(key, 80))

    def linear(in_d, out_d):
        w = jax.random.normal(next(keys), (out_d, in_d), jnp.float32) / np.sqrt(in_d)
        b = 0.1 * jax.random.normal(next(keys), (out_d,), jnp.float32)
        return w, b

    def cbn():
        gw, gb = linear(c_dim, h_dim)
        bw, bb = linear(c_dim, h_dim)
        return dict(gw=gw, gb=gb, bw=bw, bb=bb)

    params = {}
    params["fc_p_w"], params["fc_p_b"] = linear(p_dim, h_dim)
    blocks = []
    for _ in range(N_BLOCKS):
        blk = dict(bn0=cbn(), bn1=cbn())
        blk["fc0_w"], blk["fc0_b"] = linear(h_dim, h_dim)
        blk["fc1_w"], blk["fc1_b"] = linear(h_dim, h_dim)
        blocks.append(blk)
    params["blocks"] = blocks
    params["bn"] = cbn()
    params["fc_out_w"], params["fc_out_b"] = linear(h_dim, 1)
    return params


if __name__ == "__main__":
    B, T, P_DIM, C_DIM, H_DIM = 2, 128, 3, 32, 128

    key = jax.random.PRNGKey(0)
    kp, kc, kparams = jax.random.split(key, 3)
    p = jax.random.normal(kp, (B, T, P_DIM), jnp.float32)   # points (B, T, 3)
    c = jax.random.normal(kc, (B, C_DIM), jnp.float32)      # latent codes
    params = init_params(kparams, P_DIM, C_DIM, H_DIM)

    out_ref = jax.block_until_ready(decoder_cbn_ref(p, c, params))
    forward = jax.jit(decoder_cbn_pallas)

    # 1) exactness check of the kernel logic: f32 weights + f32 staging.
    packed_f32 = pack_params(params, weight_dtype=jnp.float32)
    out_f32 = jax.block_until_ready(forward(p, c, packed_f32))
    np.testing.assert_allclose(np.asarray(out_f32), np.asarray(out_ref),
                               rtol=2e-3, atol=2e-3)

    # 2) performance configuration: bf16 MXU weights AND bf16 HBM activation
    #    staging (f32 accumulation / BN stats).  Drift compounds over the 11
    #    layer passes, hence the wider tolerance.
    packed_bf16 = pack_params(params, weight_dtype=jnp.bfloat16)
    out_bf16 = jax.block_until_ready(forward(p, c, packed_bf16))
    np.testing.assert_allclose(np.asarray(out_bf16), np.asarray(out_ref),
                               rtol=5e-2, atol=5e-2)

    print("KERNEL_OK")
</pallas_src>

<mosaic_0001>
module attributes {stable_mosaic.version = 11 : i64} {
  func.func @fc1_pass_kernel(%arg0: i32, %arg1: memref<2x128x128xf32, #tpu.memory_space<vmem>>, %arg2: memref<2x128x128xf32, #tpu.memory_space<vmem>>, %arg3: memref<2x128xf32, #tpu.memory_space<vmem>>, %arg4: memref<2x128xf32, #tpu.memory_space<vmem>>, %arg5: memref<128x128xf32, #tpu.memory_space<vmem>>, %arg6: memref<1x128xf32, #tpu.memory_space<vmem>>, %arg7: memref<2x128x128xf32, #tpu.memory_space<vmem>>, %arg8: memref<1x2x128xf32, #tpu.memory_space<vmem>>) attributes {dimension_semantics = [#tpu.dimension_semantics<parallel>], iteration_bounds = array<i64: 1>, scalar_prefetch = 0 : i64, scratch_operands = 0 : i64, tpu.core_type = #tpu.core_type<tc>, window_params = [{transform_indices = @transform_0, window_bounds = array<i64: 2, 128, 128>}, {transform_indices = @transform_1, window_bounds = array<i64: 2, 128, 128>}, {pipeline_mode = #tpu.pipeline_mode<synchronous>, transform_indices = @transform_2, window_bounds = array<i64: 2, 128>}, {pipeline_mode = #tpu.pipeline_mode<synchronous>, transform_indices = @transform_3, window_bounds = array<i64: 2, 128>}, {pipeline_mode = #tpu.pipeline_mode<synchronous>, transform_indices = @transform_4, window_bounds = array<i64: 128, 128>}, {pipeline_mode = #tpu.pipeline_mode<synchronous>, transform_indices = @transform_5, window_bounds = array<i64: 1, 128>}, {transform_indices = @transform_6, window_bounds = array<i64: 2, 128, 128>}, {transform_indices = @transform_7, window_bounds = array<i64: 1, 2, 128>}]} {
    %c0 = arith.constant 0 : index
    %c0_0 = arith.constant 0 : index
    %c0_1 = arith.constant 0 : index
    %0 = vector.load %arg1[%c0, %c0_0, %c0_1] : memref<2x128x128xf32, #tpu.memory_space<vmem>>, vector<2x128x128xf32>
    %c0_2 = arith.constant 0 : index
    %c0_3 = arith.constant 0 : index
    %1 = vector.load %arg3[%c0_2, %c0_3] : memref<2x128xf32, #tpu.memory_space<vmem>>, vector<2x128xf32>
    %2 = vector.shape_cast %1 : vector<2x128xf32> to vector<2x1x128xf32>
    %3 = vector.broadcast %2 : vector<2x1x128xf32> to vector<2x128x128xf32>
    %4 = arith.mulf %0, %3 : vector<2x128x128xf32>
    %c0_4 = arith.constant 0 : index
    %c0_5 = arith.constant 0 : index
    %5 = vector.load %arg4[%c0_4, %c0_5] : memref<2x128xf32, #tpu.memory_space<vmem>>, vector<2x128xf32>
    %6 = vector.shape_cast %5 : vector<2x128xf32> to vector<2x1x128xf32>
    %7 = vector.broadcast %6 : vector<2x1x128xf32> to vector<2x128x128xf32>
    %8 = arith.addf %4, %7 : vector<2x128x128xf32>
    %cst = arith.constant 0.000000e+00 : f32
    %9 = vector.broadcast %cst : f32 to vector<2x128x128xf32>
    %10 = arith.maximumf %8, %9 : vector<2x128x128xf32>
    %11 = vector.shape_cast %10 : vector<2x128x128xf32> to vector<256x128xf32>
    %c0_6 = arith.constant 0 : index
    %c0_7 = arith.constant 0 : index
    %12 = vector.load %arg5[%c0_6, %c0_7] : memref<128x128xf32, #tpu.memory_space<vmem>>, vector<128x128xf32>
    %cst_8 = arith.constant dense<0.000000e+00> : vector<256x128xf32>
    %13 = tpu.matmul %11, %12, %cst_8 {dimension_numbers = #tpu.dot_dimension_numbers<[1], [0], [0], [1], [0, 0, 1, 1], [], []>} : vector<256x128xf32>, vector<128x128xf32>, vector<256x128xf32> -> vector<256x128xf32>
    %c0_9 = arith.constant 0 : index
    %c0_10 = arith.constant 0 : index
    %14 = vector.load %arg6[%c0_9, %c0_10] : memref<1x128xf32, #tpu.memory_space<vmem>>, vector<1x128xf32>
    %15 = vector.broadcast %14 : vector<1x128xf32> to vector<256x128xf32>
    %16 = arith.addf %13, %15 : vector<256x128xf32>
    %c0_11 = arith.constant 0 : index
    %c0_12 = arith.constant 0 : index
    %c0_13 = arith.constant 0 : index
    %17 = vector.load %arg2[%c0_11, %c0_12, %c0_13] : memref<2x128x128xf32, #tpu.memory_space<vmem>>, vector<2x128x128xf32>
    %18 = vector.shape_cast %17 : vector<2x128x128xf32> to vector<256x128xf32>
    %19 = arith.addf %16, %18 : vector<256x128xf32>
    %cst_14 = arith.constant dense<0.000000e+00> : vector<128xf32>
    %20 = vector.multi_reduction <add>, %19, %cst_14 [0] : vector<256x128xf32> to vector<128xf32>
    %21 = vector.shape_cast %20 : vector<128xf32> to vector<1x128xf32>
    %22 = arith.mulf %19, %19 : vector<256x128xf32>
    %cst_15 = arith.constant dense<0.000000e+00> : vector<128xf32>
    %23 = vector.multi_reduction <add>, %22, %cst_15 [0] : vector<256x128xf32> to vector<128xf32>
    %24 = vector.shape_cast %23 : vector<128xf32> to vector<1x128xf32>
    %25 = tpu.concatenate %21, %24 in 0 : vector<1x128xf32>, vector<1x128xf32> -> vector<2x128xf32>
    %26 = vector.shape_cast %25 : vector<2x128xf32> to vector<1x2x128xf32>
    %c0_16 = arith.constant 0 : index
    %c0_17 = arith.constant 0 : index
    %c0_18 = arith.constant 0 : index
    %27 = vector.load %arg8[%c0_16, %c0_17, %c0_18] : memref<1x2x128xf32, #tpu.memory_space<vmem>>, vector<1x2x128xf32>
    tpu.vector_store %arg8[%c0_16, %c0_17, %c0_18], %26 {strides = array<i32>} : memref<1x2x128xf32, #tpu.memory_space<vmem>>, vector<1x2x128xf32>,
    %28 = vector.shape_cast %19 : vector<256x128xf32> to vector<2x128x128xf32>
    %c0_19 = arith.constant 0 : index
    %c0_20 = arith.constant 0 : index
    %c0_21 = arith.constant 0 : index
    %29 = vector.load %arg7[%c0_19, %c0_20, %c0_21] : memref<2x128x128xf32, #tpu.memory_space<vmem>>, vector<2x128x128xf32>
    tpu.vector_store %arg7[%c0_19, %c0_20, %c0_21], %28 {strides = array<i32>} : memref<2x128x128xf32, #tpu.memory_space<vmem>>, vector<2x128x128xf32>,
    return
  }
  func.func @transform_0(%arg0: i32) -> (i32, i32, i32) {
    %c0_i32 = arith.constant 0 : i32
    %c0_i32_0 = arith.constant 0 : i32
    %c0_i32_1 = arith.constant 0 : i32
    return %c0_i32, %arg0, %c0_i32_0 : i32, i32, i32
  }
  func.func @transform_1(%arg0: i32) -> (i32, i32, i32) {
    %c0_i32 = arith.constant 0 : i32
    %c0_i32_0 = arith.constant 0 : i32
    %c0_i32_1 = arith.constant 0 : i32
    return %c0_i32, %arg0, %c0_i32_0 : i32, i32, i32
  }
  func.func @transform_2(%arg0: i32) -> (i32, i32) {
    %c0_i32 = arith.constant 0 : i32
    %c0_i32_0 = arith.constant 0 : i32
    %c0_i32_1 = arith.constant 0 : i32
    return %c0_i32, %c0_i32_0 : i32, i32
  }
  func.func @transform_3(%arg0: i32) -> (i32, i32) {
    %c0_i32 = arith.constant 0 : i32
    %c0_i32_0 = arith.constant 0 : i32
    %c0_i32_1 = arith.constant 0 : i32
    return %c0_i32, %c0_i32_0 : i32, i32
  }
  func.func @transform_4(%arg0: i32) -> (i32, i32) {
    %c0_i32 = arith.constant 0 : i32
    %c0_i32_0 = arith.constant 0 : i32
    %c0_i32_1 = arith.constant 0 : i32
    return %c0_i32, %c0_i32_0 : i32, i32
  }
  func.func @transform_5(%arg0: i32) -> (i32, i32) {
    %c0_i32 = arith.constant 0 : i32
    %c0_i32_0 = arith.constant 0 : i32
    %c0_i32_1 = arith.constant 0 : i32
    return %c0_i32, %c0_i32_0 : i32, i32
  }
  func.func @transform_6(%arg0: i32) -> (i32, i32, i32) {
    %c0_i32 = arith.constant 0 : i32
    %c0_i32_0 = arith.constant 0 : i32
    %c0_i32_1 = arith.constant 0 : i32
    return %c0_i32, %arg0, %c0_i32_0 : i32, i32, i32
  }
  func.func @transform_7(%arg0: i32) -> (i32, i32, i32) {
    %c0_i32 = arith.constant 0 : i32
    %c0_i32_0 = arith.constant 0 : i32
    %c0_i32_1 = arith.constant 0 : i32
    return %arg0, %c0_i32, %c0_i32_0 : i32, i32, i32
  }
}

module attributes {stable_mosaic.version = 11 : i64} {
  func.func @fc0_pass_kernel(%arg0: i32, %arg1: memref<2x128x128xf32, #tpu.memory_space<vmem>>, %arg2: memref<2x128xf32, #tpu.memory_space<vmem>>, %arg3: memref<2x128xf32, #tpu.memory_space<vmem>>, %arg4: memref<128x128xf32, #tpu.memory_space<vmem>>, %arg5: memref<1x128xf32, #tpu.memory_space<vmem>>, %arg6: memref<2x128x128xf32, #tpu.memory_space<vmem>>, %arg7: memref<1x2x128xf32, #tpu.memory_space<vmem>>) attributes {dimension_semantics = [#tpu.dimension_semantics<parallel>], iteration_bounds = array<i64: 1>, scalar_prefetch = 0 : i64, scratch_operands = 0 : i64, tpu.core_type = #tpu.core_type<tc>, window_params = [{transform_indices = @transform_0, window_bounds = array<i64: 2, 128, 128>}, {pipeline_mode = #tpu.pipeline_mode<synchronous>, transform_indices = @transform_1, window_bounds = array<i64: 2, 128>}, {pipeline_mode = #tpu.pipeline_mode<synchronous>, transform_indices = @transform_2, window_bounds = array<i64: 2, 128>}, {pipeline_mode = #tpu.pipeline_mode<synchronous>, transform_indices = @transform_3, window_bounds = array<i64: 128, 128>}, {pipeline_mode = #tpu.pipeline_mode<synchronous>, transform_indices = @transform_4, window_bounds = array<i64: 1, 128>}, {transform_indices = @transform_5, window_bounds = array<i64: 2, 128, 128>}, {transform_indices = @transform_6, window_bounds = array<i64: 1, 2, 128>}]} {
    %c0 = arith.constant 0 : index
    %c0_0 = arith.constant 0 : index
    %c0_1 = arith.constant 0 : index
    %0 = vector.load %arg1[%c0, %c0_0, %c0_1] : memref<2x128x128xf32, #tpu.memory_space<vmem>>, vector<2x128x128xf32>
    %c0_2 = arith.constant 0 : index
    %c0_3 = arith.constant 0 : index
    %1 = vector.load %arg2[%c0_2, %c0_3] : memref<2x128xf32, #tpu.memory_space<vmem>>, vector<2x128xf32>
    %2 = vector.shape_cast %1 : vector<2x128xf32> to vector<2x1x128xf32>
    %3 = vector.broadcast %2 : vector<2x1x128xf32> to vector<2x128x128xf32>
    %4 = arith.mulf %0, %3 : vector<2x128x128xf32>
    %c0_4 = arith.constant 0 : index
    %c0_5 = arith.constant 0 : index
    %5 = vector.load %arg3[%c0_4, %c0_5] : memref<2x128xf32, #tpu.memory_space<vmem>>, vector<2x128xf32>
    %6 = vector.shape_cast %5 : vector<2x128xf32> to vector<2x1x128xf32>
    %7 = vector.broadcast %6 : vector<2x1x128xf32> to vector<2x128x128xf32>
    %8 = arith.addf %4, %7 : vector<2x128x128xf32>
    %cst = arith.constant 0.000000e+00 : f32
    %9 = vector.broadcast %cst : f32 to vector<2x128x128xf32>
    %10 = arith.maximumf %8, %9 : vector<2x128x128xf32>
    %11 = vector.shape_cast %10 : vector<2x128x128xf32> to vector<256x128xf32>
    %c0_6 = arith.constant 0 : index
    %c0_7 = arith.constant 0 : index
    %12 = vector.load %arg4[%c0_6, %c0_7] : memref<128x128xf32, #tpu.memory_space<vmem>>, vector<128x128xf32>
    %cst_8 = arith.constant dense<0.000000e+00> : vector<256x128xf32>
    %13 = tpu.matmul %11, %12, %cst_8 {dimension_numbers = #tpu.dot_dimension_numbers<[1], [0], [0], [1], [0, 0, 1, 1], [], []>} : vector<256x128xf32>, vector<128x128xf32>, vector<256x128xf32> -> vector<256x128xf32>
    %c0_9 = arith.constant 0 : index
    %c0_10 = arith.constant 0 : index
    %14 = vector.load %arg5[%c0_9, %c0_10] : memref<1x128xf32, #tpu.memory_space<vmem>>, vector<1x128xf32>
    %15 = vector.broadcast %14 : vector<1x128xf32> to vector<256x128xf32>
    %16 = arith.addf %13, %15 : vector<256x128xf32>
    %cst_11 = arith.constant dense<0.000000e+00> : vector<128xf32>
    %17 = vector.multi_reduction <add>, %16, %cst_11 [0] : vector<256x128xf32> to vector<128xf32>
    %18 = vector.shape_cast %17 : vector<128xf32> to vector<1x128xf32>
    %19 = arith.mulf %16, %16 : vector<256x128xf32>
    %cst_12 = arith.constant dense<0.000000e+00> : vector<128xf32>
    %20 = vector.multi_reduction <add>, %19, %cst_12 [0] : vector<256x128xf32> to vector<128xf32>
    %21 = vector.shape_cast %20 : vector<128xf32> to vector<1x128xf32>
    %22 = tpu.concatenate %18, %21 in 0 : vector<1x128xf32>, vector<1x128xf32> -> vector<2x128xf32>
    %23 = vector.shape_cast %22 : vector<2x128xf32> to vector<1x2x128xf32>
    %c0_13 = arith.constant 0 : index
    %c0_14 = arith.constant 0 : index
    %c0_15 = arith.constant 0 : index
    %24 = vector.load %arg7[%c0_13, %c0_14, %c0_15] : memref<1x2x128xf32, #tpu.memory_space<vmem>>, vector<1x2x128xf32>
    tpu.vector_store %arg7[%c0_13, %c0_14, %c0_15], %23 {strides = array<i32>} : memref<1x2x128xf32, #tpu.memory_space<vmem>>, vector<1x2x128xf32>,
    %25 = vector.shape_cast %16 : vector<256x128xf32> to vector<2x128x128xf32>
    %c0_16 = arith.constant 0 : index
    %c0_17 = arith.constant 0 : index
    %c0_18 = arith.constant 0 : index
    %26 = vector.load %arg6[%c0_16, %c0_17, %c0_18] : memref<2x128x128xf32, #tpu.memory_space<vmem>>, vector<2x128x128xf32>
    tpu.vector_store %arg6[%c0_16, %c0_17, %c0_18], %25 {strides = array<i32>} : memref<2x128x128xf32, #tpu.memory_space<vmem>>, vector<2x128x128xf32>,
    return
  }
  func.func @transform_0(%arg0: i32) -> (i32, i32, i32) {
    %c0_i32 = arith.constant 0 : i32
    %c0_i32_0 = arith.constant 0 : i32
    %c0_i32_1 = arith.constant 0 : i32
    return %c0_i32, %arg0, %c0_i32_0 : i32, i32, i32
  }
  func.func @transform_1(%arg0: i32) -> (i32, i32) {
    %c0_i32 = arith.constant 0 : i32
    %c0_i32_0 = arith.constant 0 : i32
    %c0_i32_1 = arith.constant 0 : i32
    return %c0_i32, %c0_i32_0 : i32, i32
  }
  func.func @transform_2(%arg0: i32) -> (i32, i32) {
    %c0_i32 = arith.constant 0 : i32
    %c0_i32_0 = arith.constant 0 : i32
    %c0_i32_1 = arith.constant 0 : i32
    return %c0_i32, %c0_i32_0 : i32, i32
  }
  func.func @transform_3(%arg0: i32) -> (i32, i32) {
    %c0_i32 = arith.constant 0 : i32
    %c0_i32_0 = arith.constant 0 : i32
    %c0_i32_1 = arith.constant 0 : i32
    return %c0_i32, %c0_i32_0 : i32, i32
  }
  func.func @transform_4(%arg0: i32) -> (i32, i32) {
    %c0_i32 = arith.constant 0 : i32
    %c0_i32_0 = arith.constant 0 : i32
    %c0_i32_1 = arith.constant 0 : i32
    return %c0_i32, %c0_i32_0 : i32, i32
  }
  func.func @transform_5(%arg0: i32) -> (i32, i32, i32) {
    %c0_i32 = arith.constant 0 : i32
    %c0_i32_0 = arith.constant 0 : i32
    %c0_i32_1 = arith.constant 0 : i32
    return %c0_i32, %arg0, %c0_i32_0 : i32, i32, i32
  }
  func.func @transform_6(%arg0: i32) -> (i32, i32, i32) {
    %c0_i32 = arith.constant 0 : i32
    %c0_i32_0 = arith.constant 0 : i32
    %c0_i32_1 = arith.constant 0 : i32
    return %arg0, %c0_i32, %c0_i32_0 : i32, i32, i32
  }
}

module attributes {stable_mosaic.version = 11 : i64} {
  func.func @final_pass_kernel(%arg0: i32, %arg1: memref<2x128x128xf32, #tpu.memory_space<vmem>>, %arg2: memref<2x128xf32, #tpu.memory_space<vmem>>, %arg3: memref<2x128xf32, #tpu.memory_space<vmem>>, %arg4: memref<1x128xf32, #tpu.memory_space<vmem>>, %arg5: memref<1x1xf32, #tpu.memory_space<vmem>>, %arg6: memref<2x128xf32, #tpu.memory_space<vmem>>) attributes {dimension_semantics = [#tpu.dimension_semantics<parallel>], iteration_bounds = array<i64: 1>, scalar_prefetch = 0 : i64, scratch_operands = 0 : i64, tpu.core_type = #tpu.core_type<tc>, window_params = [{transform_indices = @transform_0, window_bounds = array<i64: 2, 128, 128>}, {pipeline_mode = #tpu.pipeline_mode<synchronous>, transform_indices = @transform_1, window_bounds = array<i64: 2, 128>}, {pipeline_mode = #tpu.pipeline_mode<synchronous>, transform_indices = @transform_2, window_bounds = array<i64: 2, 128>}, {pipeline_mode = #tpu.pipeline_mode<synchronous>, transform_indices = @transform_3, window_bounds = array<i64: 1, 128>}, {pipeline_mode = #tpu.pipeline_mode<synchronous>, transform_indices = @transform_4, window_bounds = array<i64: 1, 1>}, {transform_indices = @transform_5, window_bounds = array<i64: 2, 128>}]} {
    %c0 = arith.constant 0 : index
    %c0_0 = arith.constant 0 : index
    %c0_1 = arith.constant 0 : index
    %0 = vector.load %arg1[%c0, %c0_0, %c0_1] : memref<2x128x128xf32, #tpu.memory_space<vmem>>, vector<2x128x128xf32>
    %c0_2 = arith.constant 0 : index
    %c0_3 = arith.constant 0 : index
    %1 = vector.load %arg2[%c0_2, %c0_3] : memref<2x128xf32, #tpu.memory_space<vmem>>, vector<2x128xf32>
    %2 = vector.shape_cast %1 : vector<2x128xf32> to vector<2x1x128xf32>
    %3 = vector.broadcast %2 : vector<2x1x128xf32> to vector<2x128x128xf32>
    %4 = arith.mulf %0, %3 : vector<2x128x128xf32>
    %c0_4 = arith.constant 0 : index
    %c0_5 = arith.constant 0 : index
    %5 = vector.load %arg3[%c0_4, %c0_5] : memref<2x128xf32, #tpu.memory_space<vmem>>, vector<2x128xf32>
    %6 = vector.shape_cast %5 : vector<2x128xf32> to vector<2x1x128xf32>
    %7 = vector.broadcast %6 : vector<2x1x128xf32> to vector<2x128x128xf32>
    %8 = arith.addf %4, %7 : vector<2x128x128xf32>
    %cst = arith.constant 0.000000e+00 : f32
    %9 = vector.broadcast %cst : f32 to vector<2x128x128xf32>
    %10 = arith.maximumf %8, %9 : vector<2x128x128xf32>
    %c0_6 = arith.constant 0 : index
    %c0_7 = arith.constant 0 : index
    %11 = vector.load %arg4[%c0_6, %c0_7] : memref<1x128xf32, #tpu.memory_space<vmem>>, vector<1x128xf32>
    %12 = vector.shape_cast %11 : vector<1x128xf32> to vector<1x1x128xf32>
    %13 = vector.broadcast %12 : vector<1x1x128xf32> to vector<2x128x128xf32>
    %14 = arith.mulf %10, %13 : vector<2x128x128xf32>
    %cst_8 = arith.constant dense<0.000000e+00> : vector<2x128xf32>
    %15 = vector.multi_reduction <add>, %14, %cst_8 [2] : vector<2x128x128xf32> to vector<2x128xf32>
    %c0_9 = arith.constant 0 : index
    %c0_10 = arith.constant 0 : index
    %16 = vector.load %arg5[%c0_9, %c0_10] : memref<1x1xf32, #tpu.memory_space<vmem>>, vector<1x1xf32>
    %17 = vector.broadcast %16 : vector<1x1xf32> to vector<2x128xf32>
    %18 = arith.addf %15, %17 : vector<2x128xf32>
    %c0_11 = arith.constant 0 : index
    %c0_12 = arith.constant 0 : index
    %19 = vector.load %arg6[%c0_11, %c0_12] : memref<2x128xf32, #tpu.memory_space<vmem>>, vector<2x128xf32>
    tpu.vector_store %arg6[%c0_11, %c0_12], %18 {strides = array<i32>} : memref<2x128xf32, #tpu.memory_space<vmem>>, vector<2x128xf32>,
    return
  }
  func.func @transform_0(%arg0: i32) -> (i32, i32, i32) {
    %c0_i32 = arith.constant 0 : i32
    %c0_i32_0 = arith.constant 0 : i32
    %c0_i32_1 = arith.constant 0 : i32
    return %c0_i32, %arg0, %c0_i32_0 : i32, i32, i32
  }
  func.func @transform_1(%arg0: i32) -> (i32, i32) {
    %c0_i32 = arith.constant 0 : i32
    %c0_i32_0 = arith.constant 0 : i32
    %c0_i32_1 = arith.constant 0 : i32
    return %c0_i32, %c0_i32_0 : i32, i32
  }
  func.func @transform_2(%arg0: i32) -> (i32, i32) {
    %c0_i32 = arith.constant 0 : i32
    %c0_i32_0 = arith.constant 0 : i32
    %c0_i32_1 = arith.constant 0 : i32
    return %c0_i32, %c0_i32_0 : i32, i32
  }
  func.func @transform_3(%arg0: i32) -> (i32, i32) {
    %c0_i32 = arith.constant 0 : i32
    %c0_i32_0 = arith.constant 0 : i32
    %c0_i32_1 = arith.constant 0 : i32
    return %c0_i32, %c0_i32_0 : i32, i32
  }
  func.func @transform_4(%arg0: i32) -> (i32, i32) {
    %c0_i32 = arith.constant 0 : i32
    %c0_i32_0 = arith.constant 0 : i32
    %c0_i32_1 = arith.constant 0 : i32
    return %c0_i32, %c0_i32_0 : i32, i32
  }
  func.func @transform_5(%arg0: i32) -> (i32, i32) {
    %c0_i32 = arith.constant 0 : i32
    %c0_i32_0 = arith.constant 0 : i32
    return %c0_i32, %arg0 : i32, i32
  }
}

</mosaic_0001>

<llo_original>
// kernel: decoder_cbn_pallas.11
$region0: #{decoder_cbn_pallas.11}
  #allocation0 [shape = 'u32[]', space=smem, size = 0x4, offset = 0x4, fixed_abs, tag = 'smem constant byte address 0x4 - core index']
  #allocation1 [shape = 'u32[144,128]{1,0:T(1,128)}', space=vmem, size = 0x12000, scoped, tag = 'internal scratch']
  %s0 = inlined_call_operand.vmem [shape: f32[2,128,128], index: 0, kind: input, shape index: {}]
  %s1 = inlined_call_operand.vmem [shape: f32[2,128], index: 1, kind: input, shape index: {}]
  %s2 = inlined_call_operand.vmem [shape: f32[2,128], index: 2, kind: input, shape index: {}]
  %s3 = inlined_call_operand.vmem [shape: f32[128,128], index: 3, kind: input, shape index: {}]
  %s4 = inlined_call_operand.vmem [shape: f32[1,128], index: 4, kind: input, shape index: {}]
  %s5 = inlined_call_operand.vmem [shape: f32[2,128,128], index: 5, kind: output, shape index: {0}]
  %s6 = inlined_call_operand.vmem [shape: f32[1,2,128], index: 6, kind: output, shape index: {1}]
  %7 = xla_tuple %s5, %s6
  %s8 = sld [smem:[#allocation0]]
  $region38: #{decoder_cbn_pallas.11} parent=0
    _
  %s10 = ssub.s32 1, %s8
  %s11 = scalar_select 0, %s10, %s8
  // Predicated region
  $region2: #{decoder_cbn_pallas.11} parent=0 // pred_check
    _
  $region3: #{decoder_cbn_pallas.11} parent=0 // pred_check_branch
    %13 = sbr.rel (0) target = $region5
  $region4: #{decoder_cbn_pallas.11} parent=0 // pred_region
    _
  $region5: #{decoder_cbn_pallas.11} parent=0 // pred_fallthru
    _
  // Predicated region
  $region6: #{decoder_cbn_pallas.11} parent=0 // pred_check
    _
  $region7: #{decoder_cbn_pallas.11} parent=0 // pred_check_branch
    %15 = sbr.rel (0) target = $region9
  $region8: #{decoder_cbn_pallas.11} parent=0 // pred_region
    _
  $region9: #{decoder_cbn_pallas.11} parent=0 // pred_fallthru
    _
  // Predicated region
  $region10: #{decoder_cbn_pallas.11} parent=0 // pred_check
    _
  $region11: #{decoder_cbn_pallas.11} parent=0 // pred_check_branch
    %17 = sbr.rel (0) target = $region13
  $region12: #{decoder_cbn_pallas.11} parent=0 // pred_region
    _
  $region13: #{decoder_cbn_pallas.11} parent=0 // pred_fallthru
    _
  // Predicated region
  $region14: #{decoder_cbn_pallas.11} parent=0 // pred_check
    _
  $region15: #{decoder_cbn_pallas.11} parent=0 // pred_check_branch
    %19 = sbr.rel (0) target = $region17
  $region16: #{decoder_cbn_pallas.11} parent=0 // pred_region
    _
  $region17: #{decoder_cbn_pallas.11} parent=0 // pred_fallthru
    _
  // Predicated region
  $region18: #{decoder_cbn_pallas.11} parent=0 // pred_check
    _
  $region19: #{decoder_cbn_pallas.11} parent=0 // pred_check_branch
    %21 = sbr.rel (0) target = $region21
  $region20: #{decoder_cbn_pallas.11} parent=0 // pred_region
    _
  $region21: #{decoder_cbn_pallas.11} parent=0 // pred_fallthru
    _
  %v22 = vld [vmem:[%s0] sm:$0xff]
  %v23 = vld [vmem:[%s0 + $0x8] sm:$0xff]
  %v24 = vld [vmem:[%s0 + $0x10] sm:$0xff]
  %v25 = vld [vmem:[%s0 + $0x18] sm:$0xff]
  %v26 = vld [vmem:[%s0 + $0x20] sm:$0xff]
  %v27 = vld [vmem:[%s0 + $0x28] sm:$0xff]
  %v28 = vld [vmem:[%s0 + $0x30] sm:$0xff]
  %v29 = vld [vmem:[%s0 + $0x38] sm:$0xff]
  %v30 = vld [vmem:[%s0 + $0x40] sm:$0xff]
  %v31 = vld [vmem:[%s0 + $0x48] sm:$0xff]
  %v32 = vld [vmem:[%s0 + $0x50] sm:$0xff]
  %v33 = vld [vmem:[%s0 + $0x58] sm:$0xff]
  %v34 = vld [vmem:[%s0 + $0x60] sm:$0xff]
  %v35 = vld [vmem:[%s0 + $0x68] sm:$0xff]
  %v36 = vld [vmem:[%s0 + $0x70] sm:$0xff]
  %v37 = vld [vmem:[%s0 + $0x78] sm:$0xff]
  %v38 = vld [vmem:[%s0 + $0x80] sm:$0xff]
  %v39 = vld [vmem:[%s0 + $0x88] sm:$0xff]
  %v40 = vld [vmem:[%s0 + $0x90] sm:$0xff]
  %v41 = vld [vmem:[%s0 + $0x98] sm:$0xff]
  %v42 = vld [vmem:[%s0 + $0xa0] sm:$0xff]
  %v43 = vld [vmem:[%s0 + $0xa8] sm:$0xff]
  %v44 = vld [vmem:[%s0 + $0xb0] sm:$0xff]
  %v45 = vld [vmem:[%s0 + $0xb8] sm:$0xff]
  %v46 = vld [vmem:[%s0 + $0xc0] sm:$0xff]
  %v47 = vld [vmem:[%s0 + $0xc8] sm:$0xff]
  %v48 = vld [vmem:[%s0 + $0xd0] sm:$0xff]
  %v49 = vld [vmem:[%s0 + $0xd8] sm:$0xff]
  %v50 = vld [vmem:[%s0 + $0xe0] sm:$0xff]
  %v51 = vld [vmem:[%s0 + $0xe8] sm:$0xff]
  %v52 = vld [vmem:[%s0 + $0xf0] sm:$0xff]
  %v53 = vld [vmem:[%s0 + $0xf8] sm:$0xff]
  %v54 = vld [vmem:[%s1] sm:$0x3]
  %v57 = vunpack.c.l.s4 1966171168
  %v58 = vunpack.c.0.s8 %v57
  %v59 = vlaneseq
  %v60 = vshrl.u32 %v59, 7
  %v61 = vsub.s32 %v58, %v60
  %v62 = vrot.slane %v54, %v61
  %v63 = vcombine.high %v62, %v62
  %v65 = vunpack.c.l.s4 1966171168
  %v66 = vunpack.c.0.s8 %v65
  %v67 = vlaneseq
  %v68 = vshrl.u32 %v67, 7
  %v69 = vsub.s32 %v66, %v68
  %v70 = vrot.slane %v62, %v69
  %v72 = vunpack.c.l.s4 1966171168
  %v73 = vunpack.c.0.s8 %v72
  %v74 = vlaneseq
  %v75 = vshrl.u32 %v74, 7
  %v76 = vsub.s32 %v73, %v75
  %v77 = vrot.slane %v63, %v76
  %v78 = vlaneseq
  %v79 = vshrl.u32 %v78, 7
  %v80 = vsub.s32 0, %v79
  %v81 = vrot.slane %v70, %v80
  %v82 = vlaneseq
  %v83 = vshrl.u32 %v82, 7
  %v84 = vsub.s32 0, %v83
  %v85 = vrot.slane %v77, %v84
  %v88 = vmul.f32 %v22, %v81
  %v89 = vmul.f32 %v23, %v81
  %v90 = vmul.f32 %v24, %v81
  %v91 = vmul.f32 %v25, %v81
  %v92 = vmul.f32 %v26, %v81
  %v93 = vmul.f32 %v27, %v81
  %v94 = vmul.f32 %v28, %v81
  %v95 = vmul.f32 %v29, %v81
  %v96 = vmul.f32 %v30, %v81
  %v97 = vmul.f32 %v31, %v81
  %v98 = vmul.f32 %v32, %v81
  %v99 = vmul.f32 %v33, %v81
  %v100 = vmul.f32 %v34, %v81
  %v101 = vmul.f32 %v35, %v81
  %v102 = vmul.f32 %v36, %v81
  %v103 = vmul.f32 %v37, %v81
  %v104 = vmul.f32 %v38, %v85
  %v105 = vmul.f32 %v39, %v85
  %v106 = vmul.f32 %v40, %v85
  %v107 = vmul.f32 %v41, %v85
  %v108 = vmul.f32 %v42, %v85
  %v109 = vmul.f32 %v43, %v85
  %v110 = vmul.f32 %v44, %v85
  %v111 = vmul.f32 %v45, %v85
  %v112 = vmul.f32 %v46, %v85
  %v113 = vmul.f32 %v47, %v85
  %v114 = vmul.f32 %v48, %v85
  %v115 = vmul.f32 %v49, %v85
  %v116 = vmul.f32 %v50, %v85
  %v117 = vmul.f32 %v51, %v85
  %v118 = vmul.f32 %v52, %v85
  %v119 = vmul.f32 %v53, %v85
  %v120 = vld [vmem:[%s2] sm:$0x3]
  %v123 = vunpack.c.l.s4 1966171168
  %v124 = vunpack.c.0.s8 %v123
  %v125 = vlaneseq
  %v126 = vshrl.u32 %v125, 7
  %v127 = vsub.s32 %v124, %v126
  %v128 = vrot.slane %v120, %v127
  %v129 = vcombine.high %v128, %v128
  %v131 = vunpack.c.l.s4 1966171168
  %v132 = vunpack.c.0.s8 %v131
  %v133 = vlaneseq
  %v134 = vshrl.u32 %v133, 7
  %v135 = vsub.s32 %v132, %v134
  %v136 = vrot.slane %v128, %v135
  %v138 = vunpack.c.l.s4 1966171168
  %v139 = vunpack.c.0.s8 %v138
  %v140 = vlaneseq
  %v141 = vshrl.u32 %v140, 7
  %v142 = vsub.s32 %v139, %v141
  %v143 = vrot.slane %v129, %v142
  %v144 = vlaneseq
  %v145 = vshrl.u32 %v144, 7
  %v146 = vsub.s32 0, %v145
  %v147 = vrot.slane %v136, %v146
  %v148 = vlaneseq
  %v149 = vshrl.u32 %v148, 7
  %v150 = vsub.s32 0, %v149
  %v151 = vrot.slane %v143, %v150
  %v154 = vadd.f32 %v88, %v147
  %v155 = vadd.f32 %v89, %v147
  %v156 = vadd.f32 %v90, %v147
  %v157 = vadd.f32 %v91, %v147
  %v158 = vadd.f32 %v92, %v147
  %v159 = vadd.f32 %v93, %v147
  %v160 = vadd.f32 %v94, %v147
  %v161 = vadd.f32 %v95, %v147
  %v162 = vadd.f32 %v96, %v147
  %v163 = vadd.f32 %v97, %v147
  %v164 = vadd.f32 %v98, %v147
  %v165 = vadd.f32 %v99, %v147
  %v166 = vadd.f32 %v100, %v147
  %v167 = vadd.f32 %v101, %v147
  %v168 = vadd.f32 %v102, %v147
  %v169 = vadd.f32 %v103, %v147
  %v170 = vadd.f32 %v104, %v151
  %v171 = vadd.f32 %v105, %v151
  %v172 = vadd.f32 %v106, %v151
  %v173 = vadd.f32 %v107, %v151
  %v174 = vadd.f32 %v108, %v151
  %v175 = vadd.f32 %v109, %v151
  %v176 = vadd.f32 %v110, %v151
  %v177 = vadd.f32 %v111, %v151
  %v178 = vadd.f32 %v112, %v151
  %v179 = vadd.f32 %v113, %v151
  %v180 = vadd.f32 %v114, %v151
  %v181 = vadd.f32 %v115, %v151
  %v182 = vadd.f32 %v116, %v151
  %v183 = vadd.f32 %v117, %v151
  %v184 = vadd.f32 %v118, %v151
  %v185 = vadd.f32 %v119, %v151
  %v186 = vmax.f32 %v154, 0.0
  %v187 = vmax.f32 %v155, 0.0
  %v188 = vmax.f32 %v156, 0.0
  %v189 = vmax.f32 %v157, 0.0
  %v190 = vmax.f32 %v158, 0.0
  %v191 = vmax.f32 %v159, 0.0
  %v192 = vmax.f32 %v160, 0.0
  %v193 = vmax.f32 %v161, 0.0
  %v194 = vmax.f32 %v162, 0.0
  %v195 = vmax.f32 %v163, 0.0
  %v196 = vmax.f32 %v164, 0.0
  %v197 = vmax.f32 %v165, 0.0
  %v198 = vmax.f32 %v166, 0.0
  %v199 = vmax.f32 %v167, 0.0
  %v200 = vmax.f32 %v168, 0.0
  %v201 = vmax.f32 %v169, 0.0
  %v202 = vmax.f32 %v170, 0.0
  %v203 = vmax.f32 %v171, 0.0
  %v204 = vmax.f32 %v172, 0.0
  %v205 = vmax.f32 %v173, 0.0
  %v206 = vmax.f32 %v174, 0.0
  %v207 = vmax.f32 %v175, 0.0
  %v208 = vmax.f32 %v176, 0.0
  %v209 = vmax.f32 %v177, 0.0
  %v210 = vmax.f32 %v178, 0.0
  %v211 = vmax.f32 %v179, 0.0
  %v212 = vmax.f32 %v180, 0.0
  %v213 = vmax.f32 %v181, 0.0
  %v214 = vmax.f32 %v182, 0.0
  %v215 = vmax.f32 %v183, 0.0
  %v216 = vmax.f32 %v184, 0.0
  %v217 = vmax.f32 %v185, 0.0
  %v218 = vld [vmem:[%s3] sm:$0xff]
  %v219 = vld [vmem:[%s3 + $0x8] sm:$0xff]
  %v220 = vld [vmem:[%s3 + $0x10] sm:$0xff]
  %v221 = vld [vmem:[%s3 + $0x18] sm:$0xff]
  %v222 = vld [vmem:[%s3 + $0x20] sm:$0xff]
  %v223 = vld [vmem:[%s3 + $0x28] sm:$0xff]
  %v224 = vld [vmem:[%s3 + $0x30] sm:$0xff]
  %v225 = vld [vmem:[%s3 + $0x38] sm:$0xff]
  %v226 = vld [vmem:[%s3 + $0x40] sm:$0xff]
  %v227 = vld [vmem:[%s3 + $0x48] sm:$0xff]
  %v228 = vld [vmem:[%s3 + $0x50] sm:$0xff]
  %v229 = vld [vmem:[%s3 + $0x58] sm:$0xff]
  %v230 = vld [vmem:[%s3 + $0x60] sm:$0xff]
  %v231 = vld [vmem:[%s3 + $0x68] sm:$0xff]
  %v232 = vld [vmem:[%s3 + $0x70] sm:$0xff]
  %v233 = vld [vmem:[%s3 + $0x78] sm:$0xff]
  %v234 = vld [vmem:[%s4] sm:$0x1]
  %v236 = vlaneseq
  %v237 = vshrl.u32 %v236, 7
  %v238 = vsub.s32 0, %v237
  %v239 = vrot.slane %v234, %v238
  %241 = vmatprep.subr.mxu0 0.0
  %242 = vmatpush1.msra.mxu0 %v233
  %243 = vmatprep.subr.mxu0 0.0
  %244 = vmatpush1.msra.mxu0 %v232
  %245 = vmatprep.subr.mxu0 0.0
  %246 = vmatpush1.msra.mxu0 %v231
  %247 = vmatprep.subr.mxu0 0.0
  %248 = vmatpush1.msra.mxu0 %v230
  %249 = vmatprep.subr.mxu0 0.0
  %250 = vmatpush1.msra.mxu0 %v229
  %251 = vmatprep.subr.mxu0 0.0
  %252 = vmatpush1.msra.mxu0 %v228
  %253 = vmatprep.subr.mxu0 0.0
  %254 = vmatpush1.msra.mxu0 %v227
  %255 = vmatprep.subr.mxu0 0.0
  %256 = vmatpush1.msra.mxu0 %v226
  %257 = vmatprep.subr.mxu0 0.0
  %258 = vmatpush1.msra.mxu0 %v225
  %259 = vmatprep.subr.mxu0 0.0
  %260 = vmatpush1.msra.mxu0 %v224
  %261 = vmatprep.subr.mxu0 0.0
  %262 = vmatpush1.msra.mxu0 %v223
  %263 = vmatprep.subr.mxu0 0.0
  %264 = vmatpush1.msra.mxu0 %v222
  %265 = vmatprep.subr.mxu0 0.0
  %266 = vmatpush1.msra.mxu0 %v221
  %267 = vmatprep.subr.mxu0 0.0
  %268 = vmatpush1.msra.mxu0 %v220
  %269 = vmatprep.subr.mxu0 0.0
  %270 = vmatpush1.msra.mxu0 %v219
  %271 = vmatprep.subr.mxu0 0.0
  %272 = vmatpush1.msra.mxu0 %v218
  %273 = vmatprep.subr.mxu0 0.0
  %274 = vmatpush2.msra.mxu0 0.0
  %275 = vmatprep.subr.mxu0 0.0
  %276 = vmatpush2.msra.mxu0 0.0
  %277 = vmatprep.subr.mxu0 0.0
  %278 = vmatpush2.msra.mxu0 0.0
  %279 = vmatprep.subr.mxu0 0.0
  %280 = vmatpush2.msra.mxu0 0.0
  %281 = vmatprep.subr.mxu0 0.0
  %282 = vmatpush2.msra.mxu0 0.0
  %283 = vmatprep.subr.mxu0 0.0
  %284 = vmatpush2.msra.mxu0 0.0
  %285 = vmatprep.subr.mxu0 0.0
  %286 = vmatpush2.msra.mxu0 0.0
  %287 = vmatprep.subr.mxu0 0.0
  %288 = vmatpush2.msra.mxu0 0.0
  %289 = vmatprep.subr.mxu0 0.0
  %290 = vmatpush2.msra.mxu0 0.0
  %291 = vmatprep.subr.mxu0 0.0
  %292 = vmatpush2.msra.mxu0 0.0
  %293 = vmatprep.subr.mxu0 0.0
  %294 = vmatpush2.msra.mxu0 0.0
  %295 = vmatprep.subr.mxu0 0.0
  %296 = vmatpush2.msra.mxu0 0.0
  %297 = vmatprep.subr.mxu0 0.0
  %298 = vmatpush2.msra.mxu0 0.0
  %299 = vmatprep.subr.mxu0 0.0
  %300 = vmatpush2.msra.mxu0 0.0
  %301 = vmatprep.subr.mxu0 0.0
  %302 = vmatpush2.msra.mxu0 0.0
  %303 = vmatprep.subr.mxu0 0.0
  %304 = vmatpush2.msra.mxu0 0.0
  %305 = vmatprep.mubr.f32.mxu0 0.0
  %306 = vmatmul.mubr.f32.gmra.mxu0 %v186
  %v307 = vpop.f32.mrf.mxu0
  %v308 = vadd.f32 %v239, %v307
  %v309 = vpop.f32.mrf.mxu0
  %310 = vmatprep.mubr.f32.mxu0 0.0
  %311 = vmatmul.mubr.f32.gmra.mxu0 %v187
  %v312 = vpop.f32.mrf.mxu0
  %v313 = vadd.f32 %v239, %v312
  %v314 = vpop.f32.mrf.mxu0
  %315 = vmatprep.mubr.f32.mxu0 0.0
  %316 = vmatmul.mubr.f32.gmra.mxu0 %v188
  %v317 = vpop.f32.mrf.mxu0
  %v318 = vadd.f32 %v239, %v317
  %v319 = vpop.f32.mrf.mxu0
  %320 = vmatprep.mubr.f32.mxu0 0.0
  %321 = vmatmul.mubr.f32.gmra.mxu0 %v189
  %v322 = vpop.f32.mrf.mxu0
  %v323 = vadd.f32 %v239, %v322
  %v324 = vpop.f32.mrf.mxu0
  %325 = vmatprep.mubr.f32.mxu0 0.0
  %326 = vmatmul.mubr.f32.gmra.mxu0 %v190
  %v327 = vpop.f32.mrf.mxu0
  %v328 = vadd.f32 %v239, %v327
  %v329 = vpop.f32.mrf.mxu0
  %330 = vmatprep.mubr.f32.mxu0 0.0
  %331 = vmatmul.mubr.f32.gmra.mxu0 %v191
  %v332 = vpop.f32.mrf.mxu0
  %v333 = vadd.f32 %v239, %v332
  %v334 = vpop.f32.mrf.mxu0
  %335 = vmatprep.mubr.f32.mxu0 0.0
  %336 = vmatmul.mubr.f32.gmra.mxu0 %v192
  %v337 = vpop.f32.mrf.mxu0
  %v338 = vadd.f32 %v239, %v337
  %v339 = vpop.f32.mrf.mxu0
  %340 = vmatprep.mubr.f32.mxu0 0.0
  %341 = vmatmul.mubr.f32.gmra.mxu0 %v193
  %v342 = vpop.f32.mrf.mxu0
  %v343 = vadd.f32 %v239, %v342
  %v344 = vpop.f32.mrf.mxu0
  %345 = vmatprep.mubr.f32.mxu0 0.0
  %346 = vmatmul.mubr.f32.gmra.mxu0 %v194
  %v347 = vpop.f32.mrf.mxu0
  %v348 = vadd.f32 %v239, %v347
  %v349 = vpop.f32.mrf.mxu0
  %350 = vmatprep.mubr.f32.mxu0 0.0
  %351 = vmatmul.mubr.f32.gmra.mxu0 %v195
  %v352 = vpop.f32.mrf.mxu0
  %v353 = vadd.f32 %v239, %v352
  %v354 = vpop.f32.mrf.mxu0
  %355 = vmatprep.mubr.f32.mxu0 0.0
  %356 = vmatmul.mubr.f32.gmra.mxu0 %v196
  %v357 = vpop.f32.mrf.mxu0
  %v358 = vadd.f32 %v239, %v357
  %v359 = vpop.f32.mrf.mxu0
  %360 = vmatprep.mubr.f32.mxu0 0.0
  %361 = vmatmul.mubr.f32.gmra.mxu0 %v197
  %v362 = vpop.f32.mrf.mxu0
  %v363 = vadd.f32 %v239, %v362
  %v364 = vpop.f32.mrf.mxu0
  %365 = vmatprep.mubr.f32.mxu0 0.0
  %366 = vmatmul.mubr.f32.gmra.mxu0 %v198
  %v367 = vpop.f32.mrf.mxu0
  %v368 = vadd.f32 %v239, %v367
  %v369 = vpop.f32.mrf.mxu0
  %370 = vmatprep.mubr.f32.mxu0 0.0
  %371 = vmatmul.mubr.f32.gmra.mxu0 %v199
  %v372 = vpop.f32.mrf.mxu0
  %v373 = vadd.f32 %v239, %v372
  %v374 = vpop.f32.mrf.mxu0
  %375 = vmatprep.mubr.f32.mxu0 0.0
  %376 = vmatmul.mubr.f32.gmra.mxu0 %v200
  %v377 = vpop.f32.mrf.mxu0
  %v378 = vadd.f32 %v239, %v377
  %v379 = vpop.f32.mrf.mxu0
  %380 = vmatprep.mubr.f32.mxu0 0.0
  %381 = vmatmul.mubr.f32.gmra.mxu0 %v201
  %v382 = vpop.f32.mrf.mxu0
  %v383 = vadd.f32 %v239, %v382
  %v384 = vpop.f32.mrf.mxu0
  %385 = vmatprep.mubr.f32.mxu0 0.0
  %386 = vmatmul.mubr.f32.gmra.mxu0 %v202
  %v387 = vpop.f32.mrf.mxu0
  %v388 = vadd.f32 %v239, %v387
  %v389 = vpop.f32.mrf.mxu0
  %390 = vmatprep.mubr.f32.mxu0 0.0
  %391 = vmatmul.mubr.f32.gmra.mxu0 %v203
  %v392 = vpop.f32.mrf.mxu0
  %v393 = vadd.f32 %v239, %v392
  %v394 = vpop.f32.mrf.mxu0
  %395 = vmatprep.mubr.f32.mxu0 0.0
  %396 = vmatmul.mubr.f32.gmra.mxu0 %v204
  %v397 = vpop.f32.mrf.mxu0
  %v398 = vadd.f32 %v239, %v397
  %v399 = vpop.f32.mrf.mxu0
  %400 = vmatprep.mubr.f32.mxu0 0.0
  %401 = vmatmul.mubr.f32.gmra.mxu0 %v205
  %v402 = vpop.f32.mrf.mxu0
  %v403 = vadd.f32 %v239, %v402
  %v404 = vpop.f32.mrf.mxu0
  %405 = vmatprep.mubr.f32.mxu0 0.0
  %406 = vmatmul.mubr.f32.gmra.mxu0 %v206
  %v407 = vpop.f32.mrf.mxu0
  %v408 = vadd.f32 %v239, %v407
  %v409 = vpop.f32.mrf.mxu0
  %410 = vmatprep.mubr.f32.mxu0 0.0
  %411 = vmatmul.mubr.f32.gmra.mxu0 %v207
  %v412 = vpop.f32.mrf.mxu0
  %v413 = vadd.f32 %v239, %v412
  %v414 = vpop.f32.mrf.mxu0
  %415 = vmatprep.mubr.f32.mxu0 0.0
  %416 = vmatmul.mubr.f32.gmra.mxu0 %v208
  %v417 = vpop.f32.mrf.mxu0
  %v418 = vadd.f32 %v239, %v417
  %v419 = vpop.f32.mrf.mxu0
  %420 = vmatprep.mubr.f32.mxu0 0.0
  %421 = vmatmul.mubr.f32.gmra.mxu0 %v209
  %v422 = vpop.f32.mrf.mxu0
  %v423 = vadd.f32 %v239, %v422
  %v424 = vpop.f32.mrf.mxu0
  %425 = vmatprep.mubr.f32.mxu0 0.0
  %426 = vmatmul.mubr.f32.gmra.mxu0 %v210
  %v427 = vpop.f32.mrf.mxu0
  %v428 = vadd.f32 %v239, %v427
  %v429 = vpop.f32.mrf.mxu0
  %430 = vmatprep.mubr.f32.mxu0 0.0
  %431 = vmatmul.mubr.f32.gmra.mxu0 %v211
  %v432 = vpop.f32.mrf.mxu0
  %v433 = vadd.f32 %v239, %v432
  %v434 = vpop.f32.mrf.mxu0
  %435 = vmatprep.mubr.f32.mxu0 0.0
  %436 = vmatmul.mubr.f32.gmra.mxu0 %v212
  %v437 = vpop.f32.mrf.mxu0
  %v438 = vadd.f32 %v239, %v437
  %v439 = vpop.f32.mrf.mxu0
  %440 = vmatprep.mubr.f32.mxu0 0.0
  %441 = vmatmul.mubr.f32.gmra.mxu0 %v213
  %v442 = vpop.f32.mrf.mxu0
  %v443 = vadd.f32 %v239, %v442
  %v444 = vpop.f32.mrf.mxu0
  %445 = vmatprep.mubr.f32.mxu0 0.0
  %446 = vmatmul.mubr.f32.gmra.mxu0 %v214
  %v447 = vpop.f32.mrf.mxu0
  %v448 = vadd.f32 %v239, %v447
  %v449 = vpop.f32.mrf.mxu0
  %450 = vmatprep.mubr.f32.mxu0 0.0
  %451 = vmatmul.mubr.f32.gmra.mxu0 %v215
  %v452 = vpop.f32.mrf.mxu0
  %v453 = vadd.f32 %v239, %v452
  %v454 = vpop.f32.mrf.mxu0
  %455 = vmatprep.mubr.f32.mxu0 0.0
  %456 = vmatmul.mubr.f32.gmra.mxu0 %v216
  %v457 = vpop.f32.mrf.mxu0
  %v458 = vadd.f32 %v239, %v457
  %v459 = vpop.f32.mrf.mxu0
  %460 = vmatprep.mubr.f32.mxu0 0.0
  %461 = vmatmul.mubr.f32.gmra.mxu0 %v217
  %v462 = vpop.f32.mrf.mxu0
  %v463 = vadd.f32 %v239, %v462
  %v464 = vpop.f32.mrf.mxu0
  %465 = vdwg.mxu0
  %v466 = vadd.f32 %v308, %v313
  %v467 = vadd.f32 %v466, %v318
  %v468 = vadd.f32 %v467, %v323
  %v469 = vadd.f32 %v468, %v328
  %v470 = vadd.f32 %v469, %v333
  %v471 = vadd.f32 %v470, %v338
  %v472 = vadd.f32 %v471, %v343
  %v473 = vadd.f32 %v472, %v348
  %v474 = vadd.f32 %v473, %v353
  %v475 = vadd.f32 %v474, %v358
  %v476 = vadd.f32 %v475, %v363
  %v477 = vadd.f32 %v476, %v368
  %v478 = vadd.f32 %v477, %v373
  %v479 = vadd.f32 %v478, %v378
  %v480 = vadd.f32 %v479, %v383
  %v481 = vadd.f32 %v480, %v388
  %v482 = vadd.f32 %v481, %v393
  %v483 = vadd.f32 %v482, %v398
  %v484 = vadd.f32 %v483, %v403
  %v485 = vadd.f32 %v484, %v408
  %v486 = vadd.f32 %v485, %v413
  %v487 = vadd.f32 %v486, %v418
  %v488 = vadd.f32 %v487, %v423
  %v489 = vadd.f32 %v488, %v428
  %v490 = vadd.f32 %v489, %v433
  %v491 = vadd.f32 %v490, %v438
  %v492 = vadd.f32 %v491, %v443
  %v493 = vadd.f32 %v492, %v448
  %v494 = vadd.f32 %v493, %v453
  %v495 = vadd.f32 %v494, %v458
  %v496 = vadd.f32 %v495, %v463
  %v497 = vrot.slane %v496, 4
  %v498 = vadd.f32 %v496, %v497
  %v499 = vrot.slane %v498, 2
  %v500 = vadd.f32 %v498, %v499
  %v501 = vrot.slane %v500, 1
  %v502 = vadd.f32 %v500, %v501
  %v503 = vmul.f32 %v308, %v308
  %v504 = vmul.f32 %v313, %v313
  %v505 = vmul.f32 %v318, %v318
  %v506 = vmul.f32 %v323, %v323
  %v507 = vmul.f32 %v328, %v328
  %v508 = vmul.f32 %v333, %v333
  %v509 = vmul.f32 %v338, %v338
  %v510 = vmul.f32 %v343, %v343
  %v511 = vmul.f32 %v348, %v348
  %v512 = vmul.f32 %v353, %v353
  %v513 = vmul.f32 %v358, %v358
  %v514 = vmul.f32 %v363, %v363
  %v515 = vmul.f32 %v368, %v368
  %v516 = vmul.f32 %v373, %v373
  %v517 = vmul.f32 %v378, %v378
  %v518 = vmul.f32 %v383, %v383
  %v519 = vmul.f32 %v388, %v388
  %v520 = vmul.f32 %v393, %v393
  %v521 = vmul.f32 %v398, %v398
  %v522 = vmul.f32 %v403, %v403
  %v523 = vmul.f32 %v408, %v408
  %v524 = vmul.f32 %v413, %v413
  %v525 = vmul.f32 %v418, %v418
  %v526 = vmul.f32 %v423, %v423
  %v527 = vmul.f32 %v428, %v428
  %v528 = vmul.f32 %v433, %v433
  %v529 = vmul.f32 %v438, %v438
  %v530 = vmul.f32 %v443, %v443
  %v531 = vmul.f32 %v448, %v448
  %v532 = vmul.f32 %v453, %v453
  %v533 = vmul.f32 %v458, %v458
  %v534 = vmul.f32 %v463, %v463
  %v535 = vadd.f32 %v503, %v504
  %v536 = vadd.f32 %v535, %v505
  %v537 = vadd.f32 %v536, %v506
  %v538 = vadd.f32 %v537, %v507
  %v539 = vadd.f32 %v538, %v508
  %v540 = vadd.f32 %v539, %v509
  %v541 = vadd.f32 %v540, %v510
  %v542 = vadd.f32 %v541, %v511
  %v543 = vadd.f32 %v542, %v512
  %v544 = vadd.f32 %v543, %v513
  %v545 = vadd.f32 %v544, %v514
  %v546 = vadd.f32 %v545, %v515
  %v547 = vadd.f32 %v546, %v516
  %v548 = vadd.f32 %v547, %v517
  %v549 = vadd.f32 %v548, %v518
  %v550 = vadd.f32 %v549, %v519
  %v551 = vadd.f32 %v550, %v520
  %v552 = vadd.f32 %v551, %v521
  %v553 = vadd.f32 %v552, %v522
  %v554 = vadd.f32 %v553, %v523
  %v555 = vadd.f32 %v554, %v524
  %v556 = vadd.f32 %v555, %v525
  %v557 = vadd.f32 %v556, %v526
  %v558 = vadd.f32 %v557, %v527
  %v559 = vadd.f32 %v558, %v528
  %v560 = vadd.f32 %v559, %v529
  %v561 = vadd.f32 %v560, %v530
  %v562 = vadd.f32 %v561, %v531
  %v563 = vadd.f32 %v562, %v532
  %v564 = vadd.f32 %v563, %v533
  %v565 = vadd.f32 %v564, %v534
  %v566 = vrot.slane %v565, 4
  %v567 = vadd.f32 %v565, %v566
  %v568 = vrot.slane %v567, 2
  %v569 = vadd.f32 %v567, %v568
  %v570 = vrot.slane %v569, 1
  %v571 = vadd.f32 %v569, %v570
  %vm572 = vcmask 1040384
  %v573 = vsel %vm572, %v502, %v571
  %574 = vst [vmem:[%s6] sm:$0x3] %v573
  %575 = vst [vmem:[%s5] sm:$0xff] %v308
  %576 = vst [vmem:[%s5 + $0x8] sm:$0xff] %v313
  %577 = vst [vmem:[%s5 + $0x10] sm:$0xff] %v318
  %578 = vst [vmem:[%s5 + $0x18] sm:$0xff] %v323
  %579 = vst [vmem:[%s5 + $0x20] sm:$0xff] %v328
  %580 = vst [vmem:[%s5 + $0x28] sm:$0xff] %v333
  %581 = vst [vmem:[%s5 + $0x30] sm:$0xff] %v338
  %582 = vst [vmem:[%s5 + $0x38] sm:$0xff] %v343
  %583 = vst [vmem:[%s5 + $0x40] sm:$0xff] %v348
  %584 = vst [vmem:[%s5 + $0x48] sm:$0xff] %v353
  %585 = vst [vmem:[%s5 + $0x50] sm:$0xff] %v358
  %586 = vst [vmem:[%s5 + $0x58] sm:$0xff] %v363
  %587 = vst [vmem:[%s5 + $0x60] sm:$0xff] %v368
  %588 = vst [vmem:[%s5 + $0x68] sm:$0xff] %v373
  %589 = vst [vmem:[%s5 + $0x70] sm:$0xff] %v378
  %590 = vst [vmem:[%s5 + $0x78] sm:$0xff] %v383
  %591 = vst [vmem:[%s5 + $0x80] sm:$0xff] %v388
  %592 = vst [vmem:[%s5 + $0x88] sm:$0xff] %v393
  %593 = vst [vmem:[%s5 + $0x90] sm:$0xff] %v398
  %594 = vst [vmem:[%s5 + $0x98] sm:$0xff] %v403
  %595 = vst [vmem:[%s5 + $0xa0] sm:$0xff] %v408
  %596 = vst [vmem:[%s5 + $0xa8] sm:$0xff] %v413
  %597 = vst [vmem:[%s5 + $0xb0] sm:$0xff] %v418
  %598 = vst [vmem:[%s5 + $0xb8] sm:$0xff] %v423
  %599 = vst [vmem:[%s5 + $0xc0] sm:$0xff] %v428
  %600 = vst [vmem:[%s5 + $0xc8] sm:$0xff] %v433
  %601 = vst [vmem:[%s5 + $0xd0] sm:$0xff] %v438
  %602 = vst [vmem:[%s5 + $0xd8] sm:$0xff] %v443
  %603 = vst [vmem:[%s5 + $0xe0] sm:$0xff] %v448
  %604 = vst [vmem:[%s5 + $0xe8] sm:$0xff] %v453
  %605 = vst [vmem:[%s5 + $0xf0] sm:$0xff] %v458
  %606 = vst [vmem:[%s5 + $0xf8] sm:$0xff] %v463
  // Predicated region
  $region22: #{decoder_cbn_pallas.11} parent=0 // pred_check
    _
  $region23: #{decoder_cbn_pallas.11} parent=0 // pred_check_branch
    %608 = sbr.rel (0) target = $region25
  $region24: #{decoder_cbn_pallas.11} parent=0 // pred_region
    _
  $region25: #{decoder_cbn_pallas.11} parent=0 // pred_fallthru
    _
  // Predicated region
  $region26: #{decoder_cbn_pallas.11} parent=0 // pred_check
    _
  $region27: #{decoder_cbn_pallas.11} parent=0 // pred_check_branch
    %610 = sbr.rel (0) target = $region29
  $region28: #{decoder_cbn_pallas.11} parent=0 // pred_region
    _
  $region29: #{decoder_cbn_pallas.11} parent=0 // pred_fallthru
    _
  // Predicated region
  $region30: #{decoder_cbn_pallas.11} parent=0 // pred_check
    _
  $region31: #{decoder_cbn_pallas.11} parent=0 // pred_check_branch
    %612 = sbr.rel (0) target = $region33
  $region32: #{decoder_cbn_pallas.11} parent=0 // pred_region
    _
  $region33: #{decoder_cbn_pallas.11} parent=0 // pred_fallthru
    _
  // Predicated region
  $region34: #{decoder_cbn_pallas.11} parent=0 // pred_check
    _
  $region35: #{decoder_cbn_pallas.11} parent=0 // pred_check_branch
    %614 = sbr.rel (0) target = $region37
  $region36: #{decoder_cbn_pallas.11} parent=0 // pred_region
    _
  $region37: #{decoder_cbn_pallas.11} parent=0 // pred_fallthru
    _

// kernel: decoder_cbn_pallas.21
$region0: #{decoder_cbn_pallas.21}
  #allocation0 [shape = 'u32[]', space=smem, size = 0x4, offset = 0x4, fixed_abs, tag = 'smem constant byte address 0x4 - core index']
  #allocation1 [shape = 'u32[144,128]{1,0:T(1,128)}', space=vmem, size = 0x12000, scoped, tag = 'internal scratch']
  #allocation2 [shape = 'f32[1,1]{1,0:T(1,128)S(1)}', space=vmem, size = 0x200, scoped, tag = 'scoped memory for decoder_cbn_pallas.21']
  %s0 = inlined_call_operand.vmem [shape: f32[2,128,128], index: 0, kind: input, shape index: {}]
  %s1 = inlined_call_operand.vmem [shape: f32[2,128], index: 1, kind: input, shape index: {}]
  %s2 = inlined_call_operand.vmem [shape: f32[2,128], index: 2, kind: input, shape index: {}]
  %s3 = inlined_call_operand.vmem [shape: f32[1,128], index: 3, kind: input, shape index: {}]
  %s4 = inlined_call_operand.<no memory space> [shape: f32[1,1], index: 4, kind: input, shape index: {}]
  %s5 = inlined_call_operand.hbm [shape: f32[2,128], index: 5, kind: output, shape index: {}]
  %s6 = sld [smem:[#allocation0]]
  $region30: #{decoder_cbn_pallas.21} parent=0
    _
  %s8 = ssub.s32 1, %s6
  %s9 = scalar_select 0, %s8, %s6
  %v10 = vstv %s4
  %11 = vst [vmem:[#allocation2] sm:$0x1] %v10
  $region1: #{decoder_cbn_pallas.21} parent=0
    #allocation3 [shape = 'u8[1024]{0}', space=vmem, size = 0x400, scoped, tag = 'output window, operand 0, single buffered']
    #allocation4 [shape = 's32[1]{0}', space=sflag, size = 0x4, scoped, tag = 'scoped memory for decoder_cbn_pallas.21']
    %12 = vsyncpa [#allocation4], 0
    // Predicated region
    $region2: #{decoder_cbn_pallas.21} parent=1 // pred_check
      _
    $region3: #{decoder_cbn_pallas.21} parent=1 // pred_check_branch
      %14 = sbr.rel (0) target = $region5
    $region4: #{decoder_cbn_pallas.21} parent=1 // pred_region
      _
    $region5: #{decoder_cbn_pallas.21} parent=1 // pred_fallthru
      _
    // Predicated region
    $region6: #{decoder_cbn_pallas.21} parent=1 // pred_check
      _
    $region7: #{decoder_cbn_pallas.21} parent=1 // pred_check_branch
      %16 = sbr.rel (0) target = $region9
    $region8: #{decoder_cbn_pallas.21} parent=1 // pred_region
      _
    $region9: #{decoder_cbn_pallas.21} parent=1 // pred_fallthru
      _
    // Predicated region
    $region10: #{decoder_cbn_pallas.21} parent=1 // pred_check
      _
    $region11: #{decoder_cbn_pallas.21} parent=1 // pred_check_branch
      %18 = sbr.rel (0) target = $region13
    $region12: #{decoder_cbn_pallas.21} parent=1 // pred_region
      _
    $region13: #{decoder_cbn_pallas.21} parent=1 // pred_fallthru
      _
    // Predicated region
    $region14: #{decoder_cbn_pallas.21} parent=1 // pred_check
      _
    $region15: #{decoder_cbn_pallas.21} parent=1 // pred_check_branch
      %20 = sbr.rel (0) target = $region17
    $region16: #{decoder_cbn_pallas.21} parent=1 // pred_region
      _
    $region17: #{decoder_cbn_pallas.21} parent=1 // pred_fallthru
      _
    // Predicated region
    $region18: #{decoder_cbn_pallas.21} parent=1 // pred_check
      _
    $region19: #{decoder_cbn_pallas.21} parent=1 // pred_check_branch
      %22 = sbr.rel (0) target = $region21
    $region20: #{decoder_cbn_pallas.21} parent=1 // pred_region
      _
    $region21: #{decoder_cbn_pallas.21} parent=1 // pred_fallthru
      _
    %v23 = vld [vmem:[%s0] sm:$0xff]
    %v24 = vld [vmem:[%s0 + $0x8] sm:$0xff]
    %v25 = vld [vmem:[%s0 + $0x10] sm:$0xff]
    %v26 = vld [vmem:[%s0 + $0x18] sm:$0xff]
    %v27 = vld [vmem:[%s0 + $0x20] sm:$0xff]
    %v28 = vld [vmem:[%s0 + $0x28] sm:$0xff]
    %v29 = vld [vmem:[%s0 + $0x30] sm:$0xff]
    %v30 = vld [vmem:[%s0 + $0x38] sm:$0xff]
    %v31 = vld [vmem:[%s0 + $0x40] sm:$0xff]
    %v32 = vld [vmem:[%s0 + $0x48] sm:$0xff]
    %v33 = vld [vmem:[%s0 + $0x50] sm:$0xff]
    %v34 = vld [vmem:[%s0 + $0x58] sm:$0xff]
    %v35 = vld [vmem:[%s0 + $0x60] sm:$0xff]
    %v36 = vld [vmem:[%s0 + $0x68] sm:$0xff]
    %v37 = vld [vmem:[%s0 + $0x70] sm:$0xff]
    %v38 = vld [vmem:[%s0 + $0x78] sm:$0xff]
    %v39 = vld [vmem:[%s0 + $0x80] sm:$0xff]
    %v40 = vld [vmem:[%s0 + $0x88] sm:$0xff]
    %v41 = vld [vmem:[%s0 + $0x90] sm:$0xff]
    %v42 = vld [vmem:[%s0 + $0x98] sm:$0xff]
    %v43 = vld [vmem:[%s0 + $0xa0] sm:$0xff]
    %v44 = vld [vmem:[%s0 + $0xa8] sm:$0xff]
    %v45 = vld [vmem:[%s0 + $0xb0] sm:$0xff]
    %v46 = vld [vmem:[%s0 + $0xb8] sm:$0xff]
    %v47 = vld [vmem:[%s0 + $0xc0] sm:$0xff]
    %v48 = vld [vmem:[%s0 + $0xc8] sm:$0xff]
    %v49 = vld [vmem:[%s0 + $0xd0] sm:$0xff]
    %v50 = vld [vmem:[%s0 + $0xd8] sm:$0xff]
    %v51 = vld [vmem:[%s0 + $0xe0] sm:$0xff]
    %v52 = vld [vmem:[%s0 + $0xe8] sm:$0xff]
    %v53 = vld [vmem:[%s0 + $0xf0] sm:$0xff]
    %v54 = vld [vmem:[%s0 + $0xf8] sm:$0xff]
    %v55 = vld [vmem:[%s1] sm:$0x3]
    %v58 = vunpack.c.l.s4 1966171168
    %v59 = vunpack.c.0.s8 %v58
    %v60 = vlaneseq
    %v61 = vshrl.u32 %v60, 7
    %v62 = vsub.s32 %v59, %v61
    %v63 = vrot.slane %v55, %v62
    %v64 = vcombine.high %v63, %v63
    %v66 = vunpack.c.l.s4 1966171168
    %v67 = vunpack.c.0.s8 %v66
    %v68 = vlaneseq
    %v69 = vshrl.u32 %v68, 7
    %v70 = vsub.s32 %v67, %v69
    %v71 = vrot.slane %v63, %v70
    %v73 = vunpack.c.l.s4 1966171168
    %v74 = vunpack.c.0.s8 %v73
    %v75 = vlaneseq
    %v76 = vshrl.u32 %v75, 7
    %v77 = vsub.s32 %v74, %v76
    %v78 = vrot.slane %v64, %v77
    %v79 = vlaneseq
    %v80 = vshrl.u32 %v79, 7
    %v81 = vsub.s32 0, %v80
    %v82 = vrot.slane %v71, %v81
    %v83 = vlaneseq
    %v84 = vshrl.u32 %v83, 7
    %v85 = vsub.s32 0, %v84
    %v86 = vrot.slane %v78, %v85
    %v89 = vmul.f32 %v23, %v82
    %v90 = vmul.f32 %v24, %v82
    %v91 = vmul.f32 %v25, %v82
    %v92 = vmul.f32 %v26, %v82
    %v93 = vmul.f32 %v27, %v82
    %v94 = vmul.f32 %v28, %v82
    %v95 = vmul.f32 %v29, %v82
    %v96 = vmul.f32 %v30, %v82
    %v97 = vmul.f32 %v31, %v82
    %v98 = vmul.f32 %v32, %v82
    %v99 = vmul.f32 %v33, %v82
    %v100 = vmul.f32 %v34, %v82
    %v101 = vmul.f32 %v35, %v82
    %v102 = vmul.f32 %v36, %v82
    %v103 = vmul.f32 %v37, %v82
    %v104 = vmul.f32 %v38, %v82
    %v105 = vmul.f32 %v39, %v86
    %v106 = vmul.f32 %v40, %v86
    %v107 = vmul.f32 %v41, %v86
    %v108 = vmul.f32 %v42, %v86
    %v109 = vmul.f32 %v43, %v86
    %v110 = vmul.f32 %v44, %v86
    %v111 = vmul.f32 %v45, %v86
    %v112 = vmul.f32 %v46, %v86
    %v113 = vmul.f32 %v47, %v86
    %v114 = vmul.f32 %v48, %v86
    %v115 = vmul.f32 %v49, %v86
    %v116 = vmul.f32 %v50, %v86
    %v117 = vmul.f32 %v51, %v86
    %v118 = vmul.f32 %v52, %v86
    %v119 = vmul.f32 %v53, %v86
    %v120 = vmul.f32 %v54, %v86
    %v121 = vld [vmem:[%s2] sm:$0x3]
    %v124 = vunpack.c.l.s4 1966171168
    %v125 = vunpack.c.0.s8 %v124
    %v126 = vlaneseq
    %v127 = vshrl.u32 %v126, 7
    %v128 = vsub.s32 %v125, %v127
    %v129 = vrot.slane %v121, %v128
    %v130 = vcombine.high %v129, %v129
    %v132 = vunpack.c.l.s4 1966171168
    %v133 = vunpack.c.0.s8 %v132
    %v134 = vlaneseq
    %v135 = vshrl.u32 %v134, 7
    %v136 = vsub.s32 %v133, %v135
    %v137 = vrot.slane %v129, %v136
    %v139 = vunpack.c.l.s4 1966171168
    %v140 = vunpack.c.0.s8 %v139
    %v141 = vlaneseq
    %v142 = vshrl.u32 %v141, 7
    %v143 = vsub.s32 %v140, %v142
    %v144 = vrot.slane %v130, %v143
    %v145 = vlaneseq
    %v146 = vshrl.u32 %v145, 7
    %v147 = vsub.s32 0, %v146
    %v148 = vrot.slane %v137, %v147
    %v149 = vlaneseq
    %v150 = vshrl.u32 %v149, 7
    %v151 = vsub.s32 0, %v150
    %v152 = vrot.slane %v144, %v151
    %v155 = vadd.f32 %v89, %v148
    %v156 = vadd.f32 %v90, %v148
    %v157 = vadd.f32 %v91, %v148
    %v158 = vadd.f32 %v92, %v148
    %v159 = vadd.f32 %v93, %v148
    %v160 = vadd.f32 %v94, %v148
    %v161 = vadd.f32 %v95, %v148
    %v162 = vadd.f32 %v96, %v148
    %v163 = vadd.f32 %v97, %v148
    %v164 = vadd.f32 %v98, %v148
    %v165 = vadd.f32 %v99, %v148
    %v166 = vadd.f32 %v100, %v148
    %v167 = vadd.f32 %v101, %v148
    %v168 = vadd.f32 %v102, %v148
    %v169 = vadd.f32 %v103, %v148
    %v170 = vadd.f32 %v104, %v148
    %v171 = vadd.f32 %v105, %v152
    %v172 = vadd.f32 %v106, %v152
    %v173 = vadd.f32 %v107, %v152
    %v174 = vadd.f32 %v108, %v152
    %v175 = vadd.f32 %v109, %v152
    %v176 = vadd.f32 %v110, %v152
    %v177 = vadd.f32 %v111, %v152
    %v178 = vadd.f32 %v112, %v152
    %v179 = vadd.f32 %v113, %v152
    %v180 = vadd.f32 %v114, %v152
    %v181 = vadd.f32 %v115, %v152
    %v182 = vadd.f32 %v116, %v152
    %v183 = vadd.f32 %v117, %v152
    %v184 = vadd.f32 %v118, %v152
    %v185 = vadd.f32 %v119, %v152
    %v186 = vadd.f32 %v120, %v152
    %v187 = vmax.f32 %v155, 0.0
    %v188 = vmax.f32 %v156, 0.0
    %v189 = vmax.f32 %v157, 0.0
    %v190 = vmax.f32 %v158, 0.0
    %v191 = vmax.f32 %v159, 0.0
    %v192 = vmax.f32 %v160, 0.0
    %v193 = vmax.f32 %v161, 0.0
    %v194 = vmax.f32 %v162, 0.0
    %v195 = vmax.f32 %v163, 0.0
    %v196 = vmax.f32 %v164, 0.0
    %v197 = vmax.f32 %v165, 0.0
    %v198 = vmax.f32 %v166, 0.0
    %v199 = vmax.f32 %v167, 0.0
    %v200 = vmax.f32 %v168, 0.0
    %v201 = vmax.f32 %v169, 0.0
    %v202 = vmax.f32 %v170, 0.0
    %v203 = vmax.f32 %v171, 0.0
    %v204 = vmax.f32 %v172, 0.0
    %v205 = vmax.f32 %v173, 0.0
    %v206 = vmax.f32 %v174, 0.0
    %v207 = vmax.f32 %v175, 0.0
    %v208 = vmax.f32 %v176, 0.0
    %v209 = vmax.f32 %v177, 0.0
    %v210 = vmax.f32 %v178, 0.0
    %v211 = vmax.f32 %v179, 0.0
    %v212 = vmax.f32 %v180, 0.0
    %v213 = vmax.f32 %v181, 0.0
    %v214 = vmax.f32 %v182, 0.0
    %v215 = vmax.f32 %v183, 0.0
    %v216 = vmax.f32 %v184, 0.0
    %v217 = vmax.f32 %v185, 0.0
    %v218 = vmax.f32 %v186, 0.0
    %v219 = vld [vmem:[%s3] sm:$0x1]
    %v221 = vlaneseq
    %v222 = vshrl.u32 %v221, 7
    %v223 = vsub.s32 0, %v222
    %v224 = vrot.slane %v219, %v223
    %v226 = vmul.f32 %v187, %v224
    %v227 = vmul.f32 %v188, %v224
    %v228 = vmul.f32 %v189, %v224
    %v229 = vmul.f32 %v190, %v224
    %v230 = vmul.f32 %v191, %v224
    %v231 = vmul.f32 %v192, %v224
    %v232 = vmul.f32 %v193, %v224
    %v233 = vmul.f32 %v194, %v224
    %v234 = vmul.f32 %v195, %v224
    %v235 = vmul.f32 %v196, %v224
    %v236 = vmul.f32 %v197, %v224
    %v237 = vmul.f32 %v198, %v224
    %v238 = vmul.f32 %v199, %v224
    %v239 = vmul.f32 %v200, %v224
    %v240 = vmul.f32 %v201, %v224
    %v241 = vmul.f32 %v202, %v224
    %v242 = vmul.f32 %v203, %v224
    %v243 = vmul.f32 %v204, %v224
    %v244 = vmul.f32 %v205, %v224
    %v245 = vmul.f32 %v206, %v224
    %v246 = vmul.f32 %v207, %v224
    %v247 = vmul.f32 %v208, %v224
    %v248 = vmul.f32 %v209, %v224
    %v249 = vmul.f32 %v210, %v224
    %v250 = vmul.f32 %v211, %v224
    %v251 = vmul.f32 %v212, %v224
    %v252 = vmul.f32 %v213, %v224
    %v253 = vmul.f32 %v214, %v224
    %v254 = vmul.f32 %v215, %v224
    %v255 = vmul.f32 %v216, %v224
    %v256 = vmul.f32 %v217, %v224
    %v257 = vmul.f32 %v218, %v224
    %258 = vadd.xlane.f32.xlu0 %v226
    %v259 = vpop.xlane.xlu0 %258
    %260 = vadd.xlane.f32.xlu0 %v227
    %v261 = vpop.xlane.xlu0 %260
    %262 = vadd.xlane.f32.xlu0 %v228
    %v263 = vpop.xlane.xlu0 %262
    %264 = vadd.xlane.f32.xlu0 %v229
    %v265 = vpop.xlane.xlu0 %264
    %266 = vadd.xlane.f32.xlu0 %v230
    %v267 = vpop.xlane.xlu0 %266
    %268 = vadd.xlane.f32.xlu0 %v231
    %v269 = vpop.xlane.xlu0 %268
    %270 = vadd.xlane.f32.xlu0 %v232
    %v271 = vpop.xlane.xlu0 %270
    %272 = vadd.xlane.f32.xlu0 %v233
    %v273 = vpop.xlane.xlu0 %272
    %274 = vadd.xlane.f32.xlu0 %v234
    %v275 = vpop.xlane.xlu0 %274
    %276 = vadd.xlane.f32.xlu0 %v235
    %v277 = vpop.xlane.xlu0 %276
    %278 = vadd.xlane.f32.xlu0 %v236
    %v279 = vpop.xlane.xlu0 %278
    %280 = vadd.xlane.f32.xlu0 %v237
    %v281 = vpop.xlane.xlu0 %280
    %282 = vadd.xlane.f32.xlu0 %v238
    %v283 = vpop.xlane.xlu0 %282
    %284 = vadd.xlane.f32.xlu0 %v239
    %v285 = vpop.xlane.xlu0 %284
    %286 = vadd.xlane.f32.xlu0 %v240
    %v287 = vpop.xlane.xlu0 %286
    %288 = vadd.xlane.f32.xlu0 %v241
    %v289 = vpop.xlane.xlu0 %288
    %290 = vadd.xlane.f32.xlu0 %v242
    %v291 = vpop.xlane.xlu0 %290
    %292 = vadd.xlane.f32.xlu0 %v243
    %v293 = vpop.xlane.xlu0 %292
    %294 = vadd.xlane.f32.xlu0 %v244
    %v295 = vpop.xlane.xlu0 %294
    %296 = vadd.xlane.f32.xlu0 %v245
    %v297 = vpop.xlane.xlu0 %296
    %298 = vadd.xlane.f32.xlu0 %v246
    %v299 = vpop.xlane.xlu0 %298
    %300 = vadd.xlane.f32.xlu0 %v247
    %v301 = vpop.xlane.xlu0 %300
    %302 = vadd.xlane.f32.xlu0 %v248
    %v303 = vpop.xlane.xlu0 %302
    %304 = vadd.xlane.f32.xlu0 %v249
    %v305 = vpop.xlane.xlu0 %304
    %306 = vadd.xlane.f32.xlu0 %v250
    %v307 = vpop.xlane.xlu0 %306
    %308 = vadd.xlane.f32.xlu0 %v251
    %v309 = vpop.xlane.xlu0 %308
    %310 = vadd.xlane.f32.xlu0 %v252
    %v311 = vpop.xlane.xlu0 %310
    %312 = vadd.xlane.f32.xlu0 %v253
    %v313 = vpop.xlane.xlu0 %312
    %314 = vadd.xlane.f32.xlu0 %v254
    %v315 = vpop.xlane.xlu0 %314
    %316 = vadd.xlane.f32.xlu0 %v255
    %v317 = vpop.xlane.xlu0 %316
    %318 = vadd.xlane.f32.xlu0 %v256
    %v319 = vpop.xlane.xlu0 %318
    %320 = vadd.xlane.f32.xlu0 %v257
    %v321 = vpop.xlane.xlu0 %320
    %v322 = vld [vmem:[#allocation2] sm:$0x1]
    %v324 = vlaneseq
    %v325 = vshrl.u32 %v324, 7
    %v326 = vsub.s32 0, %v325
    %v327 = vrot.slane %v322, %v326
    %328 = vset.pattern.permute.xlu0 0
    %329 = vperm.xlu0 %328, %v327
    %v330 = vpop.permute.xlu0 %329
    %v332 = vadd.f32 %v259, %v330
    %v333 = vadd.f32 %v261, %v330
    %v334 = vadd.f32 %v263, %v330
    %v335 = vadd.f32 %v265, %v330
    %v336 = vadd.f32 %v267, %v330
    %v337 = vadd.f32 %v269, %v330
    %v338 = vadd.f32 %v271, %v330
    %v339 = vadd.f32 %v273, %v330
    %v340 = vadd.f32 %v275, %v330
    %v341 = vadd.f32 %v277, %v330
    %v342 = vadd.f32 %v279, %v330
    %v343 = vadd.f32 %v281, %v330
    %v344 = vadd.f32 %v283, %v330
    %v345 = vadd.f32 %v285, %v330
    %v346 = vadd.f32 %v287, %v330
    %v347 = vadd.f32 %v289, %v330
    %v348 = vadd.f32 %v291, %v330
    %v349 = vadd.f32 %v293, %v330
    %v350 = vadd.f32 %v295, %v330
    %v351 = vadd.f32 %v297, %v330
    %v352 = vadd.f32 %v299, %v330
    %v353 = vadd.f32 %v301, %v330
    %v354 = vadd.f32 %v303, %v330
    %v355 = vadd.f32 %v305, %v330
    %v356 = vadd.f32 %v307, %v330
    %v357 = vadd.f32 %v309, %v330
    %v358 = vadd.f32 %v311, %v330
    %v359 = vadd.f32 %v313, %v330
    %v360 = vadd.f32 %v315, %v330
    %v361 = vadd.f32 %v317, %v330
    %v362 = vadd.f32 %v319, %v330
    %v363 = vadd.f32 %v321, %v330
    %v396 = vlaneseq
    %v397 = vand.u32 %v396, 127
    %v398 = vlaneseq
    %v399 = vshrl.u32 %v398, 7
    %v400 = vsub.s32 %v397, %v399
    %v401 = vrot.slane %v332, %v400
    %v402 = vadd.s32 %v397, 4294967288
    %v403 = vlaneseq
    %v404 = vshrl.u32 %v403, 7
    %v405 = vsub.s32 %v402, %v404
    %v406 = vrot.slane %v333, %v405
    %vm407 = vcmask 130112
    %v408 = vsel %vm407, %v406, %v401
    %v409 = vadd.s32 %v397, 4294967280
    %v410 = vlaneseq
    %v411 = vshrl.u32 %v410, 7
    %v412 = vsub.s32 %v409, %v411
    %v413 = vrot.slane %v334, %v412
    %vm414 = vcmask 195712
    %v415 = vsel %vm414, %v413, %v408
    %v416 = vadd.s32 %v397, 4294967272
    %v417 = vlaneseq
    %v418 = vshrl.u32 %v417, 7
    %v419 = vsub.s32 %v416, %v418
    %v420 = vrot.slane %v335, %v419
    %vm421 = vcmask 261312
    %v422 = vsel %vm421, %v420, %v415
    %v423 = vadd.s32 %v397, 4294967264
    %v424 = vlaneseq
    %v425 = vshrl.u32 %v424, 7
    %v426 = vsub.s32 %v423, %v425
    %v427 = vrot.slane %v336, %v426
    %vm428 = vcmask 326912
    %v429 = vsel %vm428, %v427, %v422
    %v430 = vadd.s32 %v397, 4294967256
    %v431 = vlaneseq
    %v432 = vshrl.u32 %v431, 7
    %v433 = vsub.s32 %v430, %v432
    %v434 = vrot.slane %v337, %v433
    %vm435 = vcmask 392512
    %v436 = vsel %vm435, %v434, %v429
    %v437 = vadd.s32 %v397, 4294967248
    %v438 = vlaneseq
    %v439 = vshrl.u32 %v438, 7
    %v440 = vsub.s32 %v437, %v439
    %v441 = vrot.slane %v338, %v440
    %vm442 = vcmask 458112
    %v443 = vsel %vm442, %v441, %v436
    %v444 = vadd.s32 %v397, 4294967240
    %v445 = vlaneseq
    %v446 = vshrl.u32 %v445, 7
    %v447 = vsub.s32 %v444, %v446
    %v448 = vrot.slane %v339, %v447
    %vm449 = vcmask 523712
    %v450 = vsel %vm449, %v448, %v443
    %v451 = vadd.s32 %v397, 4294967232
    %v452 = vlaneseq
    %v453 = vshrl.u32 %v452, 7
    %v454 = vsub.s32 %v451, %v453
    %v455 = vrot.slane %v340, %v454
    %vm456 = vcmask 589312
    %v457 = vsel %vm456, %v455, %v450
    %v458 = vadd.s32 %v397, 4294967224
    %v459 = vlaneseq
    %v460 = vshrl.u32 %v459, 7
    %v461 = vsub.s32 %v458, %v460
    %v462 = vrot.slane %v341, %v461
    %vm463 = vcmask 654912
    %v464 = vsel %vm463, %v462, %v457
    %v465 = vadd.s32 %v397, 4294967216
    %v466 = vlaneseq
    %v467 = vshrl.u32 %v466, 7
    %v468 = vsub.s32 %v465, %v467
    %v469 = vrot.slane %v342, %v468
    %vm470 = vcmask 720512
    %v471 = vsel %vm470, %v469, %v464
    %v472 = vadd.s32 %v397, 4294967208
    %v473 = vlaneseq
    %v474 = vshrl.u32 %v473, 7
    %v475 = vsub.s32 %v472, %v474
    %v476 = vrot.slane %v343, %v475
    %vm477 = vcmask 786112
    %v478 = vsel %vm477, %v476, %v471
    %v479 = vadd.s32 %v397, 4294967200
    %v480 = vlaneseq
    %v481 = vshrl.u32 %v480, 7
    %v482 = vsub.s32 %v479, %v481
    %v483 = vrot.slane %v344, %v482
    %vm484 = vcmask 851712
    %v485 = vsel %vm484, %v483, %v478
    %v486 = vadd.s32 %v397, 4294967192
    %v487 = vlaneseq
    %v488 = vshrl.u32 %v487, 7
    %v489 = vsub.s32 %v486, %v488
    %v490 = vrot.slane %v345, %v489
    %vm491 = vcmask 917312
    %v492 = vsel %vm491, %v490, %v485
    %v493 = vadd.s32 %v397, 4294967184
    %v494 = vlaneseq
    %v495 = vshrl.u32 %v494, 7
    %v496 = vsub.s32 %v493, %v495
    %v497 = vrot.slane %v346, %v496
    %vm498 = vcmask 982912
    %v499 = vsel %vm498, %v497, %v492
    %v500 = vadd.s32 %v397, 4294967176
    %v501 = vlaneseq
    %v502 = vshrl.u32 %v501, 7
    %v503 = vsub.s32 %v500, %v502
    %v504 = vrot.slane %v347, %v503
    %vm505 = vcmask 1048512
    %v506 = vsel %vm505, %v504, %v499
    %v507 = vlaneseq
    %v508 = vshrl.u32 %v507, 7
    %v509 = vsub.s32 %v397, %v508
    %v510 = vrot.slane %v348, %v509
    %v511 = vlaneseq
    %v512 = vshrl.u32 %v511, 7
    %v513 = vsub.s32 %v402, %v512
    %v514 = vrot.slane %v349, %v513
    %v515 = vsel %vm407, %v514, %v510
    %v516 = vlaneseq
    %v517 = vshrl.u32 %v516, 7
    %v518 = vsub.s32 %v409, %v517
    %v519 = vrot.slane %v350, %v518
    %v520 = vsel %vm414, %v519, %v515
    %v521 = vlaneseq
    %v522 = vshrl.u32 %v521, 7
    %v523 = vsub.s32 %v416, %v522
    %v524 = vrot.slane %v351, %v523
    %v525 = vsel %vm421, %v524, %v520
    %v526 = vlaneseq
    %v527 = vshrl.u32 %v526, 7
    %v528 = vsub.s32 %v423, %v527
    %v529 = vrot.slane %v352, %v528
    %v530 = vsel %vm428, %v529, %v525
    %v531 = vlaneseq
    %v532 = vshrl.u32 %v531, 7
    %v533 = vsub.s32 %v430, %v532
    %v534 = vrot.slane %v353, %v533
    %v535 = vsel %vm435, %v534, %v530
    %v536 = vlaneseq
    %v537 = vshrl.u32 %v536, 7
    %v538 = vsub.s32 %v437, %v537
    %v539 = vrot.slane %v354, %v538
    %v540 = vsel %vm442, %v539, %v535
    %v541 = vlaneseq
    %v542 = vshrl.u32 %v541, 7
    %v543 = vsub.s32 %v444, %v542
    %v544 = vrot.slane %v355, %v543
    %v545 = vsel %vm449, %v544, %v540
    %v546 = vlaneseq
    %v547 = vshrl.u32 %v546, 7
    %v548 = vsub.s32 %v451, %v547
    %v549 = vrot.slane %v356, %v548
    %v550 = vsel %vm456, %v549, %v545
    %v551 = vlaneseq
    %v552 = vshrl.u32 %v551, 7
    %v553 = vsub.s32 %v458, %v552
    %v554 = vrot.slane %v357, %v553
    %v555 = vsel %vm463, %v554, %v550
    %v556 = vlaneseq
    %v557 = vshrl.u32 %v556, 7
    %v558 = vsub.s32 %v465, %v557
    %v559 = vrot.slane %v358, %v558
    %v560 = vsel %vm470, %v559, %v555
    %v561 = vlaneseq
    %v562 = vshrl.u32 %v561, 7
    %v563 = vsub.s32 %v472, %v562
    %v564 = vrot.slane %v359, %v563
    %v565 = vsel %vm477, %v564, %v560
    %v566 = vlaneseq
    %v567 = vshrl.u32 %v566, 7
    %v568 = vsub.s32 %v479, %v567
    %v569 = vrot.slane %v360, %v568
    %v570 = vsel %vm484, %v569, %v565
    %v571 = vlaneseq
    %v572 = vshrl.u32 %v571, 7
    %v573 = vsub.s32 %v486, %v572
    %v574 = vrot.slane %v361, %v573
    %v575 = vsel %vm491, %v574, %v570
    %v576 = vlaneseq
    %v577 = vshrl.u32 %v576, 7
    %v578 = vsub.s32 %v493, %v577
    %v579 = vrot.slane %v362, %v578
    %v580 = vsel %vm498, %v579, %v575
    %v581 = vlaneseq
    %v582 = vshrl.u32 %v581, 7
    %v583 = vsub.s32 %v500, %v582
    %v584 = vrot.slane %v363, %v583
    %v585 = vsel %vm505, %v584, %v580
    %vm586 = vcmask 1041409
    %v587 = vsel %vm586, %v585, %v506
    %589 = vst [vmem:[#allocation3] sm:$0x3] %v587
    // Predicated region
    $region22: #{decoder_cbn_pallas.21} parent=1 // pred_check
      _
    $region23: #{decoder_cbn_pallas.21} parent=1 // pred_check_branch
      %591 = sbr.rel (0) target = $region25
    $region24: #{decoder_cbn_pallas.21} parent=1 // pred_region
      %s593 = ssub.s32 32, 32
      %594 = vsyncadd [#allocation4], %s593
      %s596 = sshll.u32 [#allocation3], 4
      %s597 = int_to_ptr.vmem [resolvable:$true] %s596
      %599 = dma.vmem_to_hbm [thread:$0]  %s597, 32, %s5, [#allocation4]
    $region25: #{decoder_cbn_pallas.21} parent=1 // pred_fallthru
      _
    // Predicated region
    $region26: #{decoder_cbn_pallas.21} parent=1 // pred_check
      _
    $region27: #{decoder_cbn_pallas.21} parent=1 // pred_check_branch
      %601 = sbr.rel (0) target = $region29
    $region28: #{decoder_cbn_pallas.21} parent=1 // pred_region
      %602 = dma.done [#allocation4], 32
    $region29: #{decoder_cbn_pallas.21} parent=1 // pred_fallthru
      _
    %603 = vsyncpa [#allocation4], 1

// kernel: decoder_cbn_pallas.12
$region0: #{decoder_cbn_pallas.12}
  #allocation0 [shape = 'u32[]', space=smem, size = 0x4, offset = 0x4, fixed_abs, tag = 'smem constant byte address 0x4 - core index']
  #allocation1 [shape = 'u32[144,128]{1,0:T(1,128)}', space=vmem, size = 0x12000, scoped, tag = 'internal scratch']
  %s0 = inlined_call_operand.vmem [shape: f32[2,128,128], index: 0, kind: input, shape index: {}]
  %s1 = inlined_call_operand.vmem [shape: f32[2,128,128], index: 1, kind: input, shape index: {}]
  %s2 = inlined_call_operand.vmem [shape: f32[2,128], index: 2, kind: input, shape index: {}]
  %s3 = inlined_call_operand.vmem [shape: f32[2,128], index: 3, kind: input, shape index: {}]
  %s4 = inlined_call_operand.vmem [shape: f32[128,128], index: 4, kind: input, shape index: {}]
  %s5 = inlined_call_operand.vmem [shape: f32[1,128], index: 5, kind: input, shape index: {}]
  %s6 = inlined_call_operand.vmem [shape: f32[2,128,128], index: 6, kind: output, shape index: {0}]
  %s7 = inlined_call_operand.vmem [shape: f32[1,2,128], index: 7, kind: output, shape index: {1}]
  %8 = xla_tuple %s6, %s7
  %s9 = sld [smem:[#allocation0]]
  $region42: #{decoder_cbn_pallas.12} parent=0
    _
  %s11 = ssub.s32 1, %s9
  %s12 = scalar_select 0, %s11, %s9
  // Predicated region
  $region2: #{decoder_cbn_pallas.12} parent=0 // pred_check
    _
  $region3: #{decoder_cbn_pallas.12} parent=0 // pred_check_branch
    %14 = sbr.rel (0) target = $region5
  $region4: #{decoder_cbn_pallas.12} parent=0 // pred_region
    _
  $region5: #{decoder_cbn_pallas.12} parent=0 // pred_fallthru
    _
  // Predicated region
  $region6: #{decoder_cbn_pallas.12} parent=0 // pred_check
    _
  $region7: #{decoder_cbn_pallas.12} parent=0 // pred_check_branch
    %16 = sbr.rel (0) target = $region9
  $region8: #{decoder_cbn_pallas.12} parent=0 // pred_region
    _
  $region9: #{decoder_cbn_pallas.12} parent=0 // pred_fallthru
    _
  // Predicated region
  $region10: #{decoder_cbn_pallas.12} parent=0 // pred_check
    _
  $region11: #{decoder_cbn_pallas.12} parent=0 // pred_check_branch
    %18 = sbr.rel (0) target = $region13
  $region12: #{decoder_cbn_pallas.12} parent=0 // pred_region
    _
  $region13: #{decoder_cbn_pallas.12} parent=0 // pred_fallthru
    _
  // Predicated region
  $region14: #{decoder_cbn_pallas.12} parent=0 // pred_check
    _
  $region15: #{decoder_cbn_pallas.12} parent=0 // pred_check_branch
    %20 = sbr.rel (0) target = $region17
  $region16: #{decoder_cbn_pallas.12} parent=0 // pred_region
    _
  $region17: #{decoder_cbn_pallas.12} parent=0 // pred_fallthru
    _
  // Predicated region
  $region18: #{decoder_cbn_pallas.12} parent=0 // pred_check
    _
  $region19: #{decoder_cbn_pallas.12} parent=0 // pred_check_branch
    %22 = sbr.rel (0) target = $region21
  $region20: #{decoder_cbn_pallas.12} parent=0 // pred_region
    _
  $region21: #{decoder_cbn_pallas.12} parent=0 // pred_fallthru
    _
  // Predicated region
  $region22: #{decoder_cbn_pallas.12} parent=0 // pred_check
    _
  $region23: #{decoder_cbn_pallas.12} parent=0 // pred_check_branch
    %24 = sbr.rel (0) target = $region25
  $region24: #{decoder_cbn_pallas.12} parent=0 // pred_region
    _
  $region25: #{decoder_cbn_pallas.12} parent=0 // pred_fallthru
    _
  %v25 = vld [vmem:[%s0] sm:$0xff]
  %v26 = vld [vmem:[%s0 + $0x8] sm:$0xff]
  %v27 = vld [vmem:[%s0 + $0x10] sm:$0xff]
  %v28 = vld [vmem:[%s0 + $0x18] sm:$0xff]
  %v29 = vld [vmem:[%s0 + $0x20] sm:$0xff]
  %v30 = vld [vmem:[%s0 + $0x28] sm:$0xff]
  %v31 = vld [vmem:[%s0 + $0x30] sm:$0xff]
  %v32 = vld [vmem:[%s0 + $0x38] sm:$0xff]
  %v33 = vld [vmem:[%s0 + $0x40] sm:$0xff]
  %v34 = vld [vmem:[%s0 + $0x48] sm:$0xff]
  %v35 = vld [vmem:[%s0 + $0x50] sm:$0xff]
  %v36 = vld [vmem:[%s0 + $0x58] sm:$0xff]
  %v37 = vld [vmem:[%s0 + $0x60] sm:$0xff]
  %v38 = vld [vmem:[%s0 + $0x68] sm:$0xff]
  %v39 = vld [vmem:[%s0 + $0x70] sm:$0xff]
  %v40 = vld [vmem:[%s0 + $0x78] sm:$0xff]
  %v41 = vld [vmem:[%s0 + $0x80] sm:$0xff]
  %v42 = vld [vmem:[%s0 + $0x88] sm:$0xff]
  %v43 = vld [vmem:[%s0 + $0x90] sm:$0xff]
  %v44 = vld [vmem:[%s0 + $0x98] sm:$0xff]
  %v45 = vld [vmem:[%s0 + $0xa0] sm:$0xff]
  %v46 = vld [vmem:[%s0 + $0xa8] sm:$0xff]
  %v47 = vld [vmem:[%s0 + $0xb0] sm:$0xff]
  %v48 = vld [vmem:[%s0 + $0xb8] sm:$0xff]
  %v49 = vld [vmem:[%s0 + $0xc0] sm:$0xff]
  %v50 = vld [vmem:[%s0 + $0xc8] sm:$0xff]
  %v51 = vld [vmem:[%s0 + $0xd0] sm:$0xff]
  %v52 = vld [vmem:[%s0 + $0xd8] sm:$0xff]
  %v53 = vld [vmem:[%s0 + $0xe0] sm:$0xff]
  %v54 = vld [vmem:[%s0 + $0xe8] sm:$0xff]
  %v55 = vld [vmem:[%s0 + $0xf0] sm:$0xff]
  %v56 = vld [vmem:[%s0 + $0xf8] sm:$0xff]
  %v57 = vld [vmem:[%s2] sm:$0x3]
  %v60 = vunpack.c.l.s4 1966171168
  %v61 = vunpack.c.0.s8 %v60
  %v62 = vlaneseq
  %v63 = vshrl.u32 %v62, 7
  %v64 = vsub.s32 %v61, %v63
  %v65 = vrot.slane %v57, %v64
  %v66 = vcombine.high %v65, %v65
  %v68 = vunpack.c.l.s4 1966171168
  %v69 = vunpack.c.0.s8 %v68
  %v70 = vlaneseq
  %v71 = vshrl.u32 %v70, 7
  %v72 = vsub.s32 %v69, %v71
  %v73 = vrot.slane %v65, %v72
  %v75 = vunpack.c.l.s4 1966171168
  %v76 = vunpack.c.0.s8 %v75
  %v77 = vlaneseq
  %v78 = vshrl.u32 %v77, 7
  %v79 = vsub.s32 %v76, %v78
  %v80 = vrot.slane %v66, %v79
  %v81 = vlaneseq
  %v82 = vshrl.u32 %v81, 7
  %v83 = vsub.s32 0, %v82
  %v84 = vrot.slane %v73, %v83
  %v85 = vlaneseq
  %v86 = vshrl.u32 %v85, 7
  %v87 = vsub.s32 0, %v86
  %v88 = vrot.slane %v80, %v87
  %v91 = vmul.f32 %v25, %v84
  %v92 = vmul.f32 %v26, %v84
  %v93 = vmul.f32 %v27, %v84
  %v94 = vmul.f32 %v28, %v84
  %v95 = vmul.f32 %v29, %v84
  %v96 = vmul.f32 %v30, %v84
  %v97 = vmul.f32 %v31, %v84
  %v98 = vmul.f32 %v32, %v84
  %v99 = vmul.f32 %v33, %v84
  %v100 = vmul.f32 %v34, %v84
  %v101 = vmul.f32 %v35, %v84
  %v102 = vmul.f32 %v36, %v84
  %v103 = vmul.f32 %v37, %v84
  %v104 = vmul.f32 %v38, %v84
  %v105 = vmul.f32 %v39, %v84
  %v106 = vmul.f32 %v40, %v84
  %v107 = vmul.f32 %v41, %v88
  %v108 = vmul.f32 %v42, %v88
  %v109 = vmul.f32 %v43, %v88
  %v110 = vmul.f32 %v44, %v88
  %v111 = vmul.f32 %v45, %v88
  %v112 = vmul.f32 %v46, %v88
  %v113 = vmul.f32 %v47, %v88
  %v114 = vmul.f32 %v48, %v88
  %v115 = vmul.f32 %v49, %v88
  %v116 = vmul.f32 %v50, %v88
  %v117 = vmul.f32 %v51, %v88
  %v118 = vmul.f32 %v52, %v88
  %v119 = vmul.f32 %v53, %v88
  %v120 = vmul.f32 %v54, %v88
  %v121 = vmul.f32 %v55, %v88
  %v122 = vmul.f32 %v56, %v88
  %v123 = vld [vmem:[%s3] sm:$0x3]
  %v126 = vunpack.c.l.s4 1966171168
  %v127 = vunpack.c.0.s8 %v126
  %v128 = vlaneseq
  %v129 = vshrl.u32 %v128, 7
  %v130 = vsub.s32 %v127, %v129
  %v131 = vrot.slane %v123, %v130
  %v132 = vcombine.high %v131, %v131
  %v134 = vunpack.c.l.s4 1966171168
  %v135 = vunpack.c.0.s8 %v134
  %v136 = vlaneseq
  %v137 = vshrl.u32 %v136, 7
  %v138 = vsub.s32 %v135, %v137
  %v139 = vrot.slane %v131, %v138
  %v141 = vunpack.c.l.s4 1966171168
  %v142 = vunpack.c.0.s8 %v141
  %v143 = vlaneseq
  %v144 = vshrl.u32 %v143, 7
  %v145 = vsub.s32 %v142, %v144
  %v146 = vrot.slane %v132, %v145
  %v147 = vlaneseq
  %v148 = vshrl.u32 %v147, 7
  %v149 = vsub.s32 0, %v148
  %v150 = vrot.slane %v139, %v149
  %v151 = vlaneseq
  %v152 = vshrl.u32 %v151, 7
  %v153 = vsub.s32 0, %v152
  %v154 = vrot.slane %v146, %v153
  %v157 = vadd.f32 %v91, %v150
  %v158 = vadd.f32 %v92, %v150
  %v159 = vadd.f32 %v93, %v150
  %v160 = vadd.f32 %v94, %v150
  %v161 = vadd.f32 %v95, %v150
  %v162 = vadd.f32 %v96, %v150
  %v163 = vadd.f32 %v97, %v150
  %v164 = vadd.f32 %v98, %v150
  %v165 = vadd.f32 %v99, %v150
  %v166 = vadd.f32 %v100, %v150
  %v167 = vadd.f32 %v101, %v150
  %v168 = vadd.f32 %v102, %v150
  %v169 = vadd.f32 %v103, %v150
  %v170 = vadd.f32 %v104, %v150
  %v171 = vadd.f32 %v105, %v150
  %v172 = vadd.f32 %v106, %v150
  %v173 = vadd.f32 %v107, %v154
  %v174 = vadd.f32 %v108, %v154
  %v175 = vadd.f32 %v109, %v154
  %v176 = vadd.f32 %v110, %v154
  %v177 = vadd.f32 %v111, %v154
  %v178 = vadd.f32 %v112, %v154
  %v179 = vadd.f32 %v113, %v154
  %v180 = vadd.f32 %v114, %v154
  %v181 = vadd.f32 %v115, %v154
  %v182 = vadd.f32 %v116, %v154
  %v183 = vadd.f32 %v117, %v154
  %v184 = vadd.f32 %v118, %v154
  %v185 = vadd.f32 %v119, %v154
  %v186 = vadd.f32 %v120, %v154
  %v187 = vadd.f32 %v121, %v154
  %v188 = vadd.f32 %v122, %v154
  %v189 = vmax.f32 %v157, 0.0
  %v190 = vmax.f32 %v158, 0.0
  %v191 = vmax.f32 %v159, 0.0
  %v192 = vmax.f32 %v160, 0.0
  %v193 = vmax.f32 %v161, 0.0
  %v194 = vmax.f32 %v162, 0.0
  %v195 = vmax.f32 %v163, 0.0
  %v196 = vmax.f32 %v164, 0.0
  %v197 = vmax.f32 %v165, 0.0
  %v198 = vmax.f32 %v166, 0.0
  %v199 = vmax.f32 %v167, 0.0
  %v200 = vmax.f32 %v168, 0.0
  %v201 = vmax.f32 %v169, 0.0
  %v202 = vmax.f32 %v170, 0.0
  %v203 = vmax.f32 %v171, 0.0
  %v204 = vmax.f32 %v172, 0.0
  %v205 = vmax.f32 %v173, 0.0
  %v206 = vmax.f32 %v174, 0.0
  %v207 = vmax.f32 %v175, 0.0
  %v208 = vmax.f32 %v176, 0.0
  %v209 = vmax.f32 %v177, 0.0
  %v210 = vmax.f32 %v178, 0.0
  %v211 = vmax.f32 %v179, 0.0
  %v212 = vmax.f32 %v180, 0.0
  %v213 = vmax.f32 %v181, 0.0
  %v214 = vmax.f32 %v182, 0.0
  %v215 = vmax.f32 %v183, 0.0
  %v216 = vmax.f32 %v184, 0.0
  %v217 = vmax.f32 %v185, 0.0
  %v218 = vmax.f32 %v186, 0.0
  %v219 = vmax.f32 %v187, 0.0
  %v220 = vmax.f32 %v188, 0.0
  %v221 = vld [vmem:[%s4] sm:$0xff]
  %v222 = vld [vmem:[%s4 + $0x8] sm:$0xff]
  %v223 = vld [vmem:[%s4 + $0x10] sm:$0xff]
  %v224 = vld [vmem:[%s4 + $0x18] sm:$0xff]
  %v225 = vld [vmem:[%s4 + $0x20] sm:$0xff]
  %v226 = vld [vmem:[%s4 + $0x28] sm:$0xff]
  %v227 = vld [vmem:[%s4 + $0x30] sm:$0xff]
  %v228 = vld [vmem:[%s4 + $0x38] sm:$0xff]
  %v229 = vld [vmem:[%s4 + $0x40] sm:$0xff]
  %v230 = vld [vmem:[%s4 + $0x48] sm:$0xff]
  %v231 = vld [vmem:[%s4 + $0x50] sm:$0xff]
  %v232 = vld [vmem:[%s4 + $0x58] sm:$0xff]
  %v233 = vld [vmem:[%s4 + $0x60] sm:$0xff]
  %v234 = vld [vmem:[%s4 + $0x68] sm:$0xff]
  %v235 = vld [vmem:[%s4 + $0x70] sm:$0xff]
  %v236 = vld [vmem:[%s4 + $0x78] sm:$0xff]
  %v237 = vld [vmem:[%s5] sm:$0x1]
  %v239 = vlaneseq
  %v240 = vshrl.u32 %v239, 7
  %v241 = vsub.s32 0, %v240
  %v242 = vrot.slane %v237, %v241
  %244 = vmatprep.subr.mxu0 0.0
  %245 = vmatpush1.msra.mxu0 %v236
  %246 = vmatprep.subr.mxu0 0.0
  %247 = vmatpush1.msra.mxu0 %v235
  %248 = vmatprep.subr.mxu0 0.0
  %249 = vmatpush1.msra.mxu0 %v234
  %250 = vmatprep.subr.mxu0 0.0
  %251 = vmatpush1.msra.mxu0 %v233
  %252 = vmatprep.subr.mxu0 0.0
  %253 = vmatpush1.msra.mxu0 %v232
  %254 = vmatprep.subr.mxu0 0.0
  %255 = vmatpush1.msra.mxu0 %v231
  %256 = vmatprep.subr.mxu0 0.0
  %257 = vmatpush1.msra.mxu0 %v230
  %258 = vmatprep.subr.mxu0 0.0
  %259 = vmatpush1.msra.mxu0 %v229
  %260 = vmatprep.subr.mxu0 0.0
  %261 = vmatpush1.msra.mxu0 %v228
  %262 = vmatprep.subr.mxu0 0.0
  %263 = vmatpush1.msra.mxu0 %v227
  %264 = vmatprep.subr.mxu0 0.0
  %265 = vmatpush1.msra.mxu0 %v226
  %266 = vmatprep.subr.mxu0 0.0
  %267 = vmatpush1.msra.mxu0 %v225
  %268 = vmatprep.subr.mxu0 0.0
  %269 = vmatpush1.msra.mxu0 %v224
  %270 = vmatprep.subr.mxu0 0.0
  %271 = vmatpush1.msra.mxu0 %v223
  %272 = vmatprep.subr.mxu0 0.0
  %273 = vmatpush1.msra.mxu0 %v222
  %274 = vmatprep.subr.mxu0 0.0
  %275 = vmatpush1.msra.mxu0 %v221
  %276 = vmatprep.subr.mxu0 0.0
  %277 = vmatpush2.msra.mxu0 0.0
  %278 = vmatprep.subr.mxu0 0.0
  %279 = vmatpush2.msra.mxu0 0.0
  %280 = vmatprep.subr.mxu0 0.0
  %281 = vmatpush2.msra.mxu0 0.0
  %282 = vmatprep.subr.mxu0 0.0
  %283 = vmatpush2.msra.mxu0 0.0
  %284 = vmatprep.subr.mxu0 0.0
  %285 = vmatpush2.msra.mxu0 0.0
  %286 = vmatprep.subr.mxu0 0.0
  %287 = vmatpush2.msra.mxu0 0.0
  %288 = vmatprep.subr.mxu0 0.0
  %289 = vmatpush2.msra.mxu0 0.0
  %290 = vmatprep.subr.mxu0 0.0
  %291 = vmatpush2.msra.mxu0 0.0
  %292 = vmatprep.subr.mxu0 0.0
  %293 = vmatpush2.msra.mxu0 0.0
  %294 = vmatprep.subr.mxu0 0.0
  %295 = vmatpush2.msra.mxu0 0.0
  %296 = vmatprep.subr.mxu0 0.0
  %297 = vmatpush2.msra.mxu0 0.0
  %298 = vmatprep.subr.mxu0 0.0
  %299 = vmatpush2.msra.mxu0 0.0
  %300 = vmatprep.subr.mxu0 0.0
  %301 = vmatpush2.msra.mxu0 0.0
  %302 = vmatprep.subr.mxu0 0.0
  %303 = vmatpush2.msra.mxu0 0.0
  %304 = vmatprep.subr.mxu0 0.0
  %305 = vmatpush2.msra.mxu0 0.0
  %306 = vmatprep.subr.mxu0 0.0
  %307 = vmatpush2.msra.mxu0 0.0
  %308 = vmatprep.mubr.f32.mxu0 0.0
  %309 = vmatmul.mubr.f32.gmra.mxu0 %v189
  %v310 = vpop.f32.mrf.mxu0
  %v311 = vadd.f32 %v242, %v310
  %v312 = vpop.f32.mrf.mxu0
  %313 = vmatprep.mubr.f32.mxu0 0.0
  %314 = vmatmul.mubr.f32.gmra.mxu0 %v190
  %v315 = vpop.f32.mrf.mxu0
  %v316 = vadd.f32 %v242, %v315
  %v317 = vpop.f32.mrf.mxu0
  %318 = vmatprep.mubr.f32.mxu0 0.0
  %319 = vmatmul.mubr.f32.gmra.mxu0 %v191
  %v320 = vpop.f32.mrf.mxu0
  %v321 = vadd.f32 %v242, %v320
  %v322 = vpop.f32.mrf.mxu0
  %323 = vmatprep.mubr.f32.mxu0 0.0
  %324 = vmatmul.mubr.f32.gmra.mxu0 %v192
  %v325 = vpop.f32.mrf.mxu0
  %v326 = vadd.f32 %v242, %v325
  %v327 = vpop.f32.mrf.mxu0
  %328 = vmatprep.mubr.f32.mxu0 0.0
  %329 = vmatmul.mubr.f32.gmra.mxu0 %v193
  %v330 = vpop.f32.mrf.mxu0
  %v331 = vadd.f32 %v242, %v330
  %v332 = vpop.f32.mrf.mxu0
  %333 = vmatprep.mubr.f32.mxu0 0.0
  %334 = vmatmul.mubr.f32.gmra.mxu0 %v194
  %v335 = vpop.f32.mrf.mxu0
  %v336 = vadd.f32 %v242, %v335
  %v337 = vpop.f32.mrf.mxu0
  %338 = vmatprep.mubr.f32.mxu0 0.0
  %339 = vmatmul.mubr.f32.gmra.mxu0 %v195
  %v340 = vpop.f32.mrf.mxu0
  %v341 = vadd.f32 %v242, %v340
  %v342 = vpop.f32.mrf.mxu0
  %343 = vmatprep.mubr.f32.mxu0 0.0
  %344 = vmatmul.mubr.f32.gmra.mxu0 %v196
  %v345 = vpop.f32.mrf.mxu0
  %v346 = vadd.f32 %v242, %v345
  %v347 = vpop.f32.mrf.mxu0
  %348 = vmatprep.mubr.f32.mxu0 0.0
  %349 = vmatmul.mubr.f32.gmra.mxu0 %v197
  %v350 = vpop.f32.mrf.mxu0
  %v351 = vadd.f32 %v242, %v350
  %v352 = vpop.f32.mrf.mxu0
  %353 = vmatprep.mubr.f32.mxu0 0.0
  %354 = vmatmul.mubr.f32.gmra.mxu0 %v198
  %v355 = vpop.f32.mrf.mxu0
  %v356 = vadd.f32 %v242, %v355
  %v357 = vpop.f32.mrf.mxu0
  %358 = vmatprep.mubr.f32.mxu0 0.0
  %359 = vmatmul.mubr.f32.gmra.mxu0 %v199
  %v360 = vpop.f32.mrf.mxu0
  %v361 = vadd.f32 %v242, %v360
  %v362 = vpop.f32.mrf.mxu0
  %363 = vmatprep.mubr.f32.mxu0 0.0
  %364 = vmatmul.mubr.f32.gmra.mxu0 %v200
  %v365 = vpop.f32.mrf.mxu0
  %v366 = vadd.f32 %v242, %v365
  %v367 = vpop.f32.mrf.mxu0
  %368 = vmatprep.mubr.f32.mxu0 0.0
  %369 = vmatmul.mubr.f32.gmra.mxu0 %v201
  %v370 = vpop.f32.mrf.mxu0
  %v371 = vadd.f32 %v242, %v370
  %v372 = vpop.f32.mrf.mxu0
  %373 = vmatprep.mubr.f32.mxu0 0.0
  %374 = vmatmul.mubr.f32.gmra.mxu0 %v202
  %v375 = vpop.f32.mrf.mxu0
  %v376 = vadd.f32 %v242, %v375
  %v377 = vpop.f32.mrf.mxu0
  %378 = vmatprep.mubr.f32.mxu0 0.0
  %379 = vmatmul.mubr.f32.gmra.mxu0 %v203
  %v380 = vpop.f32.mrf.mxu0
  %v381 = vadd.f32 %v242, %v380
  %v382 = vpop.f32.mrf.mxu0
  %383 = vmatprep.mubr.f32.mxu0 0.0
  %384 = vmatmul.mubr.f32.gmra.mxu0 %v204
  %v385 = vpop.f32.mrf.mxu0
  %v386 = vadd.f32 %v242, %v385
  %v387 = vpop.f32.mrf.mxu0
  %388 = vmatprep.mubr.f32.mxu0 0.0
  %389 = vmatmul.mubr.f32.gmra.mxu0 %v205
  %v390 = vpop.f32.mrf.mxu0
  %v391 = vadd.f32 %v242, %v390
  %v392 = vpop.f32.mrf.mxu0
  %393 = vmatprep.mubr.f32.mxu0 0.0
  %394 = vmatmul.mubr.f32.gmra.mxu0 %v206
  %v395 = vpop.f32.mrf.mxu0
  %v396 = vadd.f32 %v242, %v395
  %v397 = vpop.f32.mrf.mxu0
  %398 = vmatprep.mubr.f32.mxu0 0.0
  %399 = vmatmul.mubr.f32.gmra.mxu0 %v207
  %v400 = vpop.f32.mrf.mxu0
  %v401 = vadd.f32 %v242, %v400
  %v402 = vpop.f32.mrf.mxu0
  %403 = vmatprep.mubr.f32.mxu0 0.0
  %404 = vmatmul.mubr.f32.gmra.mxu0 %v208
  %v405 = vpop.f32.mrf.mxu0
  %v406 = vadd.f32 %v242, %v405
  %v407 = vpop.f32.mrf.mxu0
  %408 = vmatprep.mubr.f32.mxu0 0.0
  %409 = vmatmul.mubr.f32.gmra.mxu0 %v209
  %v410 = vpop.f32.mrf.mxu0
  %v411 = vadd.f32 %v242, %v410
  %v412 = vpop.f32.mrf.mxu0
  %413 = vmatprep.mubr.f32.mxu0 0.0
  %414 = vmatmul.mubr.f32.gmra.mxu0 %v210
  %v415 = vpop.f32.mrf.mxu0
  %v416 = vadd.f32 %v242, %v415
  %v417 = vpop.f32.mrf.mxu0
  %418 = vmatprep.mubr.f32.mxu0 0.0
  %419 = vmatmul.mubr.f32.gmra.mxu0 %v211
  %v420 = vpop.f32.mrf.mxu0
  %v421 = vadd.f32 %v242, %v420
  %v422 = vpop.f32.mrf.mxu0
  %423 = vmatprep.mubr.f32.mxu0 0.0
  %424 = vmatmul.mubr.f32.gmra.mxu0 %v212
  %v425 = vpop.f32.mrf.mxu0
  %v426 = vadd.f32 %v242, %v425
  %v427 = vpop.f32.mrf.mxu0
  %428 = vmatprep.mubr.f32.mxu0 0.0
  %429 = vmatmul.mubr.f32.gmra.mxu0 %v213
  %v430 = vpop.f32.mrf.mxu0
  %v431 = vadd.f32 %v242, %v430
  %v432 = vpop.f32.mrf.mxu0
  %433 = vmatprep.mubr.f32.mxu0 0.0
  %434 = vmatmul.mubr.f32.gmra.mxu0 %v214
  %v435 = vpop.f32.mrf.mxu0
  %v436 = vadd.f32 %v242, %v435
  %v437 = vpop.f32.mrf.mxu0
  %438 = vmatprep.mubr.f32.mxu0 0.0
  %439 = vmatmul.mubr.f32.gmra.mxu0 %v215
  %v440 = vpop.f32.mrf.mxu0
  %v441 = vadd.f32 %v242, %v440
  %v442 = vpop.f32.mrf.mxu0
  %443 = vmatprep.mubr.f32.mxu0 0.0
  %444 = vmatmul.mubr.f32.gmra.mxu0 %v216
  %v445 = vpop.f32.mrf.mxu0
  %v446 = vadd.f32 %v242, %v445
  %v447 = vpop.f32.mrf.mxu0
  %448 = vmatprep.mubr.f32.mxu0 0.0
  %449 = vmatmul.mubr.f32.gmra.mxu0 %v217
  %v450 = vpop.f32.mrf.mxu0
  %v451 = vadd.f32 %v242, %v450
  %v452 = vpop.f32.mrf.mxu0
  %453 = vmatprep.mubr.f32.mxu0 0.0
  %454 = vmatmul.mubr.f32.gmra.mxu0 %v218
  %v455 = vpop.f32.mrf.mxu0
  %v456 = vadd.f32 %v242, %v455
  %v457 = vpop.f32.mrf.mxu0
  %458 = vmatprep.mubr.f32.mxu0 0.0
  %459 = vmatmul.mubr.f32.gmra.mxu0 %v219
  %v460 = vpop.f32.mrf.mxu0
  %v461 = vadd.f32 %v242, %v460
  %v462 = vpop.f32.mrf.mxu0
  %463 = vmatprep.mubr.f32.mxu0 0.0
  %464 = vmatmul.mubr.f32.gmra.mxu0 %v220
  %v465 = vpop.f32.mrf.mxu0
  %v466 = vadd.f32 %v242, %v465
  %v467 = vpop.f32.mrf.mxu0
  %468 = vdwg.mxu0
  %v469 = vld [vmem:[%s1] sm:$0xff]
  %v470 = vld [vmem:[%s1 + $0x8] sm:$0xff]
  %v471 = vld [vmem:[%s1 + $0x10] sm:$0xff]
  %v472 = vld [vmem:[%s1 + $0x18] sm:$0xff]
  %v473 = vld [vmem:[%s1 + $0x20] sm:$0xff]
  %v474 = vld [vmem:[%s1 + $0x28] sm:$0xff]
  %v475 = vld [vmem:[%s1 + $0x30] sm:$0xff]
  %v476 = vld [vmem:[%s1 + $0x38] sm:$0xff]
  %v477 = vld [vmem:[%s1 + $0x40] sm:$0xff]
  %v478 = vld [vmem:[%s1 + $0x48] sm:$0xff]
  %v479 = vld [vmem:[%s1 + $0x50] sm:$0xff]
  %v480 = vld [vmem:[%s1 + $0x58] sm:$0xff]
  %v481 = vld [vmem:[%s1 + $0x60] sm:$0xff]
  %v482 = vld [vmem:[%s1 + $0x68] sm:$0xff]
  %v483 = vld [vmem:[%s1 + $0x70] sm:$0xff]
  %v484 = vld [vmem:[%s1 + $0x78] sm:$0xff]
  %v485 = vld [vmem:[%s1 + $0x80] sm:$0xff]
  %v486 = vld [vmem:[%s1 + $0x88] sm:$0xff]
  %v487 = vld [vmem:[%s1 + $0x90] sm:$0xff]
  %v488 = vld [vmem:[%s1 + $0x98] sm:$0xff]
  %v489 = vld [vmem:[%s1 + $0xa0] sm:$0xff]
  %v490 = vld [vmem:[%s1 + $0xa8] sm:$0xff]
  %v491 = vld [vmem:[%s1 + $0xb0] sm:$0xff]
  %v492 = vld [vmem:[%s1 + $0xb8] sm:$0xff]
  %v493 = vld [vmem:[%s1 + $0xc0] sm:$0xff]
  %v494 = vld [vmem:[%s1 + $0xc8] sm:$0xff]
  %v495 = vld [vmem:[%s1 + $0xd0] sm:$0xff]
  %v496 = vld [vmem:[%s1 + $0xd8] sm:$0xff]
  %v497 = vld [vmem:[%s1 + $0xe0] sm:$0xff]
  %v498 = vld [vmem:[%s1 + $0xe8] sm:$0xff]
  %v499 = vld [vmem:[%s1 + $0xf0] sm:$0xff]
  %v500 = vld [vmem:[%s1 + $0xf8] sm:$0xff]
  %v501 = vadd.f32 %v311, %v469
  %v502 = vadd.f32 %v316, %v470
  %v503 = vadd.f32 %v321, %v471
  %v504 = vadd.f32 %v326, %v472
  %v505 = vadd.f32 %v331, %v473
  %v506 = vadd.f32 %v336, %v474
  %v507 = vadd.f32 %v341, %v475
  %v508 = vadd.f32 %v346, %v476
  %v509 = vadd.f32 %v351, %v477
  %v510 = vadd.f32 %v356, %v478
  %v511 = vadd.f32 %v361, %v479
  %v512 = vadd.f32 %v366, %v480
  %v513 = vadd.f32 %v371, %v481
  %v514 = vadd.f32 %v376, %v482
  %v515 = vadd.f32 %v381, %v483
  %v516 = vadd.f32 %v386, %v484
  %v517 = vadd.f32 %v391, %v485
  %v518 = vadd.f32 %v396, %v486
  %v519 = vadd.f32 %v401, %v487
  %v520 = vadd.f32 %v406, %v488
  %v521 = vadd.f32 %v411, %v489
  %v522 = vadd.f32 %v416, %v490
  %v523 = vadd.f32 %v421, %v491
  %v524 = vadd.f32 %v426, %v492
  %v525 = vadd.f32 %v431, %v493
  %v526 = vadd.f32 %v436, %v494
  %v527 = vadd.f32 %v441, %v495
  %v528 = vadd.f32 %v446, %v496
  %v529 = vadd.f32 %v451, %v497
  %v530 = vadd.f32 %v456, %v498
  %v531 = vadd.f32 %v461, %v499
  %v532 = vadd.f32 %v466, %v500
  %v533 = vadd.f32 %v501, %v502
  %v534 = vadd.f32 %v533, %v503
  %v535 = vadd.f32 %v534, %v504
  %v536 = vadd.f32 %v535, %v505
  %v537 = vadd.f32 %v536, %v506
  %v538 = vadd.f32 %v537, %v507
  %v539 = vadd.f32 %v538, %v508
  %v540 = vadd.f32 %v539, %v509
  %v541 = vadd.f32 %v540, %v510
  %v542 = vadd.f32 %v541, %v511
  %v543 = vadd.f32 %v542, %v512
  %v544 = vadd.f32 %v543, %v513
  %v545 = vadd.f32 %v544, %v514
  %v546 = vadd.f32 %v545, %v515
  %v547 = vadd.f32 %v546, %v516
  %v548 = vadd.f32 %v547, %v517
  %v549 = vadd.f32 %v548, %v518
  %v550 = vadd.f32 %v549, %v519
  %v551 = vadd.f32 %v550, %v520
  %v552 = vadd.f32 %v551, %v521
  %v553 = vadd.f32 %v552, %v522
  %v554 = vadd.f32 %v553, %v523
  %v555 = vadd.f32 %v554, %v524
  %v556 = vadd.f32 %v555, %v525
  %v557 = vadd.f32 %v556, %v526
  %v558 = vadd.f32 %v557, %v527
  %v559 = vadd.f32 %v558, %v528
  %v560 = vadd.f32 %v559, %v529
  %v561 = vadd.f32 %v560, %v530
  %v562 = vadd.f32 %v561, %v531
  %v563 = vadd.f32 %v562, %v532
  %v564 = vrot.slane %v563, 4
  %v565 = vadd.f32 %v563, %v564
  %v566 = vrot.slane %v565, 2
  %v567 = vadd.f32 %v565, %v566
  %v568 = vrot.slane %v567, 1
  %v569 = vadd.f32 %v567, %v568
  %v570 = vmul.f32 %v501, %v501
  %v571 = vmul.f32 %v502, %v502
  %v572 = vmul.f32 %v503, %v503
  %v573 = vmul.f32 %v504, %v504
  %v574 = vmul.f32 %v505, %v505
  %v575 = vmul.f32 %v506, %v506
  %v576 = vmul.f32 %v507, %v507
  %v577 = vmul.f32 %v508, %v508
  %v578 = vmul.f32 %v509, %v509
  %v579 = vmul.f32 %v510, %v510
  %v580 = vmul.f32 %v511, %v511
  %v581 = vmul.f32 %v512, %v512
  %v582 = vmul.f32 %v513, %v513
  %v583 = vmul.f32 %v514, %v514
  %v584 = vmul.f32 %v515, %v515
  %v585 = vmul.f32 %v516, %v516
  %v586 = vmul.f32 %v517, %v517
  %v587 = vmul.f32 %v518, %v518
  %v588 = vmul.f32 %v519, %v519
  %v589 = vmul.f32 %v520, %v520
  %v590 = vmul.f32 %v521, %v521
  %v591 = vmul.f32 %v522, %v522
  %v592 = vmul.f32 %v523, %v523
  %v593 = vmul.f32 %v524, %v524
  %v594 = vmul.f32 %v525, %v525
  %v595 = vmul.f32 %v526, %v526
  %v596 = vmul.f32 %v527, %v527
  %v597 = vmul.f32 %v528, %v528
  %v598 = vmul.f32 %v529, %v529
  %v599 = vmul.f32 %v530, %v530
  %v600 = vmul.f32 %v531, %v531
  %v601 = vmul.f32 %v532, %v532
  %v602 = vadd.f32 %v570, %v571
  %v603 = vadd.f32 %v602, %v572
  %v604 = vadd.f32 %v603, %v573
  %v605 = vadd.f32 %v604, %v574
  %v606 = vadd.f32 %v605, %v575
  %v607 = vadd.f32 %v606, %v576
  %v608 = vadd.f32 %v607, %v577
  %v609 = vadd.f32 %v608, %v578
  %v610 = vadd.f32 %v609, %v579
  %v611 = vadd.f32 %v610, %v580
  %v612 = vadd.f32 %v611, %v581
  %v613 = vadd.f32 %v612, %v582
  %v614 = vadd.f32 %v613, %v583
  %v615 = vadd.f32 %v614, %v584
  %v616 = vadd.f32 %v615, %v585
  %v617 = vadd.f32 %v616, %v586
  %v618 = vadd.f32 %v617, %v587
  %v619 = vadd.f32 %v618, %v588
  %v620 = vadd.f32 %v619, %v589
  %v621 = vadd.f32 %v620, %v590
  %v622 = vadd.f32 %v621, %v591
  %v623 = vadd.f32 %v622, %v592
  %v624 = vadd.f32 %v623, %v593
  %v625 = vadd.f32 %v624, %v594
  %v626 = vadd.f32 %v625, %v595
  %v627 = vadd.f32 %v626, %v596
  %v628 = vadd.f32 %v627, %v597
  %v629 = vadd.f32 %v628, %v598
  %v630 = vadd.f32 %v629, %v599
  %v631 = vadd.f32 %v630, %v600
  %v632 = vadd.f32 %v631, %v601
  %v633 = vrot.slane %v632, 4
  %v634 = vadd.f32 %v632, %v633
  %v635 = vrot.slane %v634, 2
  %v636 = vadd.f32 %v634, %v635
  %v637 = vrot.slane %v636, 1
  %v638 = vadd.f32 %v636, %v637
  %vm639 = vcmask 1040384
  %v640 = vsel %vm639, %v569, %v638
  %641 = vst [vmem:[%s7] sm:$0x3] %v640
  %642 = vst [vmem:[%s6] sm:$0xff] %v501
  %643 = vst [vmem:[%s6 + $0x8] sm:$0xff] %v502
  %644 = vst [vmem:[%s6 + $0x10] sm:$0xff] %v503
  %645 = vst [vmem:[%s6 + $0x18] sm:$0xff] %v504
  %646 = vst [vmem:[%s6 + $0x20] sm:$0xff] %v505
  %647 = vst [vmem:[%s6 + $0x28] sm:$0xff] %v506
  %648 = vst [vmem:[%s6 + $0x30] sm:$0xff] %v507
  %649 = vst [vmem:[%s6 + $0x38] sm:$0xff] %v508
  %650 = vst [vmem:[%s6 + $0x40] sm:$0xff] %v509
  %651 = vst [vmem:[%s6 + $0x48] sm:$0xff] %v510
  %652 = vst [vmem:[%s6 + $0x50] sm:$0xff] %v511
  %653 = vst [vmem:[%s6 + $0x58] sm:$0xff] %v512
  %654 = vst [vmem:[%s6 + $0x60] sm:$0xff] %v513
  %655 = vst [vmem:[%s6 + $0x68] sm:$0xff] %v514
  %656 = vst [vmem:[%s6 + $0x70] sm:$0xff] %v515
  %657 = vst [vmem:[%s6 + $0x78] sm:$0xff] %v516
  %658 = vst [vmem:[%s6 + $0x80] sm:$0xff] %v517
  %659 = vst [vmem:[%s6 + $0x88] sm:$0xff] %v518
  %660 = vst [vmem:[%s6 + $0x90] sm:$0xff] %v519
  %661 = vst [vmem:[%s6 + $0x98] sm:$0xff] %v520
  %662 = vst [vmem:[%s6 + $0xa0] sm:$0xff] %v521
  %663 = vst [vmem:[%s6 + $0xa8] sm:$0xff] %v522
  %664 = vst [vmem:[%s6 + $0xb0] sm:$0xff] %v523
  %665 = vst [vmem:[%s6 + $0xb8] sm:$0xff] %v524
  %666 = vst [vmem:[%s6 + $0xc0] sm:$0xff] %v525
  %667 = vst [vmem:[%s6 + $0xc8] sm:$0xff] %v526
  %668 = vst [vmem:[%s6 + $0xd0] sm:$0xff] %v527
  %669 = vst [vmem:[%s6 + $0xd8] sm:$0xff] %v528
  %670 = vst [vmem:[%s6 + $0xe0] sm:$0xff] %v529
  %671 = vst [vmem:[%s6 + $0xe8] sm:$0xff] %v530
  %672 = vst [vmem:[%s6 + $0xf0] sm:$0xff] %v531
  %673 = vst [vmem:[%s6 + $0xf8] sm:$0xff] %v532
  // Predicated region
  $region26: #{decoder_cbn_pallas.12} parent=0 // pred_check
    _
  $region27: #{decoder_cbn_pallas.12} parent=0 // pred_check_branch
    %675 = sbr.rel (0) target = $region29
  $region28: #{decoder_cbn_pallas.12} parent=0 // pred_region
    _
  $region29: #{decoder_cbn_pallas.12} parent=0 // pred_fallthru
    _
  // Predicated region
  $region30: #{decoder_cbn_pallas.12} parent=0 // pred_check
    _
  $region31: #{decoder_cbn_pallas.12} parent=0 // pred_check_branch
    %677 = sbr.rel (0) target = $region33
  $region32: #{decoder_cbn_pallas.12} parent=0 // pred_region
    _
  $region33: #{decoder_cbn_pallas.12} parent=0 // pred_fallthru
    _
  // Predicated region
  $region34: #{decoder_cbn_pallas.12} parent=0 // pred_check
    _
  $region35: #{decoder_cbn_pallas.12} parent=0 // pred_check_branch
    %679 = sbr.rel (0) target = $region37
  $region36: #{decoder_cbn_pallas.12} parent=0 // pred_region
    _
  $region37: #{decoder_cbn_pallas.12} parent=0 // pred_fallthru
    _
  // Predicated region
  $region38: #{decoder_cbn_pallas.12} parent=0 // pred_check
    _
  $region39: #{decoder_cbn_pallas.12} parent=0 // pred_check_branch
    %681 = sbr.rel (0) target = $region41
  $region40: #{decoder_cbn_pallas.12} parent=0 // pred_region
    _
  $region41: #{decoder_cbn_pallas.12} parent=0 // pred_fallthru
    _

</llo_original>
